<compile_context>
chip_gen: v5e
topology: v5e:2x2
jax: 0.10.0
libtpu: 0.0.40
codegen_flags: <defaults>
</compile_context>

<pallas_src>
import math
import functools

import jax
import jax.numpy as jnp
from jax import lax
from jax.experimental import pallas as pl
from jax.experimental.pallas import tpu as pltpu

# ---- config (small, consistent with BertLayer's forward) ----
BATCH = 2
SEQ = 8
HIDDEN = 32
NUM_HEADS = 4
HEAD_DIM = HIDDEN // NUM_HEADS
INTERMEDIATE = 64
LN_EPS = 1e-12


def _gelu(x):
    # gelu(x) = x * 0.5 * (1 + erf(x / sqrt(2)))  (exact erf form, as in the module)
    return x * 0.5 * (1.0 + lax.erf(x / math.sqrt(2.0)))


def _layernorm(x, gamma, beta):
    # PyTorch LayerNorm: biased variance, eps inside sqrt
    mean = jnp.mean(x, axis=-1, keepdims=True)
    var = jnp.mean(jnp.square(x - mean), axis=-1, keepdims=True)
    inv = lax.rsqrt(var + LN_EPS)
    return (x - mean) * inv * gamma + beta


def bert_layer_kernel(x_ref, mask_ref, w_qkv_ref, b_qkv_ref, w_ao_ref,
                      w_ffn_ref, b_misc_ref, out_ref):
    bb, S, H = x_ref.shape            # batch block, seq, hidden (all static)
    NH, HD, I = NUM_HEADS, HEAD_DIM, INTERMEDIATE
    f32, bf16 = jnp.float32, jnp.bfloat16

    x3 = x_ref[...].astype(f32)                    # (bb, S, H)
    x2 = x3.reshape(bb * S, H)                     # leading-dim merge (free)
    xb = x2.astype(bf16)                           # MXU operand
    mask = mask_ref[...].astype(f32)               # (bb, S, S) — reused by every head

    wqkv = w_qkv_ref[...]                          # (3, NH, H, HD)  bf16  [Q, K, V]
    bqkv = b_qkv_ref[...]                          # (3, NH, 1, HD)  f32
    wao = w_ao_ref[...]                            # (NH, HD, H)     bf16
    bm = b_misc_ref[...]                           # (8, I)          f32, lane-aligned rows

    bao = bm[0:1, :H]
    g1 = bm[1:2, :H]
    b1 = bm[2:3, :H]
    bo = bm[3:4, :H]
    g2 = bm[4:5, :H]
    b2 = bm[5:6, :H]
    bi = bm[6:7, :]

    inv_sqrt_hd = 1.0 / math.sqrt(HD)

    # ---- self-attention + output projection, one head at a time ----
    # Heads index the *leading* axis of the weight slabs (free): no lane
    # slicing, no broadcast/duplication of x, mask or weights.  The head merge
    # is folded into the accumulated (bb*S, HD) @ (HD, H) output projection.
    att_pre = x2 + bao                             # residual + attn-output bias (f32)
    for n in range(NH):
        def proj(p):
            y = jnp.dot(xb, wqkv[p, n], preferred_element_type=f32) + bqkv[p, n]
            return y.reshape(bb, S, HD)            # sublane-split at tile boundary
        q, k, v = proj(0), proj(1), proj(2)

        s = jnp.einsum('bqd,bkd->bqk', q.astype(bf16), k.astype(bf16),
                       preferred_element_type=f32)
        s = s * inv_sqrt_hd + mask                 # same shape: no broadcast needed
        s = s - jnp.max(s, axis=-1, keepdims=True)
        p_att = jnp.exp(s)
        p_att = p_att * pl.reciprocal(jnp.sum(p_att, axis=-1, keepdims=True),
                                      approx=True)
        ctx = jnp.einsum('bqk,bkd->bqd', p_att.astype(bf16), v.astype(bf16),
                         preferred_element_type=f32)            # (bb, S, HD)

        att_pre = att_pre + jnp.dot(ctx.reshape(bb * S, HD).astype(bf16), wao[n],
                                    preferred_element_type=f32)  # (bb*S, H)

    att = _layernorm(att_pre, g1, b1)

    # ---- intermediate (exact-erf GELU) + output dense + residual + LayerNorm ----
    wi = w_ffn_ref[0]                               # (H, I) bf16
    woT = w_ffn_ref[1]                              # (H, I) bf16 == Wo^T
    inter = _gelu(jnp.dot(att.astype(bf16), wi, preferred_element_type=f32) + bi)
    out = jnp.einsum('si,hi->sh', inter.astype(bf16), woT,
                     preferred_element_type=f32) + bo           # == inter @ Wo
    out = _layernorm(out + att, g2, b2)

    out_ref[...] = out.reshape(bb, S, H).astype(out_ref.dtype)


def make_params(key):
    """Deterministic raw parameters.  Linear weights stored as (in, out) so
    y = x @ W + b (equivalent to nn.Linear's x @ W^T + b).  Biases 1-D."""
    ks = jax.random.split(key, 16)
    std = 0.02

    def lin(kw, kb, d_in, d_out):
        w = jax.random.normal(kw, (d_in, d_out), jnp.float32) * std
        b = jax.random.normal(kb, (d_out,), jnp.float32) * std
        return w, b

    wq, bq = lin(ks[0], ks[1], HIDDEN, HIDDEN)
    wk, bk = lin(ks[2], ks[3], HIDDEN, HIDDEN)
    wv, bv = lin(ks[4], ks[5], HIDDEN, HIDDEN)
    wao, bao = lin(ks[6], ks[7], HIDDEN, HIDDEN)
    g1 = 1.0 + 0.1 * jax.random.normal(ks[8], (HIDDEN,), jnp.float32)
    b1 = 0.1 * jax.random.normal(ks[9], (HIDDEN,), jnp.float32)
    wi, bi = lin(ks[10], ks[11], HIDDEN, INTERMEDIATE)
    wo, bo = lin(ks[12], ks[13], INTERMEDIATE, HIDDEN)
    g2 = 1.0 + 0.1 * jax.random.normal(ks[14], (HIDDEN,), jnp.float32)
    b2 = 0.1 * jax.random.normal(ks[15], (HIDDEN,), jnp.float32)
    return (wq, bq, wk, bk, wv, bv, wao, bao, g1, b1, wi, bi, wo, bo, g2, b2)


def pack_params(raw):
    """Pack the 16 raw tensors into 5 consolidated kernel inputs.

    Matmul weights are stored bf16 (MXU-native, half the DMA bytes); biases and
    LayerNorm params stay f32.  All per-head slabs are indexed on leading axes
    only; b_misc is one (8, INTERMEDIATE) slab with every vector at lane 0."""
    (wq, bq, wk, bk, wv, bv, wao, bao, g1, b1, wi, bi, wo, bo, g2, b2) = raw
    NH, HD, H, I = NUM_HEADS, HEAD_DIM, HIDDEN, INTERMEDIATE

    def per_head_w(w):                 # (H, H) -> (NH, H, HD), head-major out dim
        return w.reshape(H, NH, HD).transpose(1, 0, 2)

    def per_head_b(b):                 # (H,) -> (NH, 1, HD)
        return b.reshape(NH, 1, HD)

    w_qkv = jnp.stack([per_head_w(wq), per_head_w(wk), per_head_w(wv)]
                      ).astype(jnp.bfloat16)                    # (3, NH, H, HD)
    b_qkv = jnp.stack([per_head_b(bq), per_head_b(bk), per_head_b(bv)]
                      ).astype(jnp.float32)                     # (3, NH, 1, HD)
    w_ao = wao.reshape(NH, HD, H).astype(jnp.bfloat16)          # (NH, HD, H)
    w_ffn = jnp.stack([wi, wo.T]).astype(jnp.bfloat16)          # (2, H, I)

    def row(vec):                       # pad each vector to a full I-wide row
        return jnp.pad(vec, (0, I - vec.shape[0]))

    b_misc = jnp.stack([row(bao), row(g1), row(b1), row(bo), row(g2), row(b2),
                        row(bi), jnp.zeros((I,), jnp.float32)])  # (8, I)
    return w_qkv, b_qkv, w_ao, w_ffn, b_misc


@functools.partial(jax.jit, static_argnames=("batch_block",))
def bert_layer(x, attn_mask, packed_params, batch_block=BATCH):
    B, S, H = x.shape
    bb = batch_block
    assert B % bb == 0
    w_qkv, b_qkv, w_ao, w_ffn, b_misc = packed_params

    def batched(shape):
        rest = tuple(shape[1:])
        nz = len(rest)
        return pl.BlockSpec((bb,) + rest, lambda b, _nz=nz: (b,) + (0,) * _nz)

    def full(arr):
        nd = arr.ndim
        return pl.BlockSpec(arr.shape, lambda b, _nd=nd: (0,) * _nd)

    return pl.pallas_call(
        bert_layer_kernel,
        out_shape=jax.ShapeDtypeStruct((B, S, H), x.dtype),
        grid_spec=pltpu.PrefetchScalarGridSpec(
            num_scalar_prefetch=0,
            grid=(B // bb,),
            in_specs=[batched(x.shape), batched(attn_mask.shape),
                      full(w_qkv), full(b_qkv), full(w_ao), full(w_ffn),
                      full(b_misc)],
            out_specs=batched((B, S, H)),
        ),
        compiler_params=pltpu.CompilerParams(
            dimension_semantics=("arbitrary",) if bb == B else ("parallel",),
        ),
    )(x, attn_mask, w_qkv, b_qkv, w_ao, w_ffn, b_misc)


def reference(x, attn_mask, raw):
    """Pure-JAX f32 reference (standard BERT layer) for sanity checking."""
    (wq, bq, wk, bk, wv, bv, wao, bao, g1, b1, wi, bi, wo, bo, g2, b2) = raw
    B, S, H = x.shape

    def ln(y, g, b):
        m = jnp.mean(y, axis=-1, keepdims=True)
        v = jnp.mean(jnp.square(y - m), axis=-1, keepdims=True)
        return (y - m) / jnp.sqrt(v + LN_EPS) * g + b

    q = (x @ wq + bq).reshape(B, S, NUM_HEADS, HEAD_DIM).transpose(0, 2, 1, 3)
    k = (x @ wk + bk).reshape(B, S, NUM_HEADS, HEAD_DIM).transpose(0, 2, 1, 3)
    v = (x @ wv + bv).reshape(B, S, NUM_HEADS, HEAD_DIM).transpose(0, 2, 1, 3)
    s = jnp.einsum('bhqd,bhkd->bhqk', q, k) / math.sqrt(HEAD_DIM)
    s = s + attn_mask[:, None, :, :]
    p = jax.nn.softmax(s, axis=-1)
    ctx = jnp.einsum('bhqk,bhkd->bhqd', p, v).transpose(0, 2, 1, 3).reshape(B, S, H)
    att = ln(ctx @ wao + bao + x, g1, b1)
    inter = att @ wi + bi
    inter = inter * 0.5 * (1.0 + lax.erf(inter / math.sqrt(2.0)))
    return ln(inter @ wo + bo + att, g2, b2)


if __name__ == "__main__":
    key = jax.random.PRNGKey(0)
    k_x, k_m, k_p = jax.random.split(key, 3)

    x = jax.random.normal(k_x, (BATCH, SEQ, HIDDEN), jnp.float32)
    # additive attention mask: 0 for kept positions, -10000 for masked ones
    keep = (jax.random.uniform(k_m, (BATCH, 1, SEQ)) > 0.2).astype(jnp.float32)
    attn_mask = jnp.broadcast_to((1.0 - keep) * -10000.0,
                                 (BATCH, SEQ, SEQ)).astype(jnp.float32)

    raw = make_params(k_p)
    packed = pack_params(raw)
    ref = reference(x, attn_mask, raw)

    # batch_block=BATCH collapses the grid to one step (preferred at this tiny
    # size on all chips); batch_block=1 keeps a "parallel" grid and is verified
    # for correctness as well.
    for bb in (BATCH, 1):
        out = jax.block_until_ready(bert_layer(x, attn_mask, packed,
                                               batch_block=bb))
        assert out.shape == (BATCH, SEQ, HIDDEN)
        err = float(jnp.max(jnp.abs(out - ref)))
        # bf16 MXU operands (f32 accumulate) vs. an all-f32 reference: compare
        # at a bf16-appropriate tolerance.
        assert err < 2e-3, (bb, err)

    print("KERNEL_OK")
</pallas_src>

<mosaic_0001>
module attributes {stable_mosaic.version = 11 : i64} {
  func.func @bert_layer_kernel(%arg0: i32, %arg1: memref<2x8x32xf32, #tpu.memory_space<vmem>>, %arg2: memref<2x8x8xf32, #tpu.memory_space<vmem>>, %arg3: memref<3x4x32x8xbf16, #tpu.memory_space<vmem>>, %arg4: memref<3x4x1x8xf32, #tpu.memory_space<vmem>>, %arg5: memref<4x8x32xbf16, #tpu.memory_space<vmem>>, %arg6: memref<2x32x64xbf16, #tpu.memory_space<vmem>>, %arg7: memref<8x64xf32, #tpu.memory_space<vmem>>, %arg8: memref<2x8x32xf32, #tpu.memory_space<vmem>>) attributes {dimension_semantics = [#tpu.dimension_semantics<arbitrary>], iteration_bounds = array<i64: 1>, scalar_prefetch = 0 : i64, scratch_operands = 0 : i64, tpu.core_type = #tpu.core_type<tc>, window_params = [{transform_indices = @transform_0, window_bounds = array<i64: 2, 8, 32>}, {transform_indices = @transform_1, window_bounds = array<i64: 2, 8, 8>}, {pipeline_mode = #tpu.pipeline_mode<synchronous>, transform_indices = @transform_2, window_bounds = array<i64: 3, 4, 32, 8>}, {pipeline_mode = #tpu.pipeline_mode<synchronous>, transform_indices = @transform_3, window_bounds = array<i64: 3, 4, 1, 8>}, {pipeline_mode = #tpu.pipeline_mode<synchronous>, transform_indices = @transform_4, window_bounds = array<i64: 4, 8, 32>}, {pipeline_mode = #tpu.pipeline_mode<synchronous>, transform_indices = @transform_5, window_bounds = array<i64: 2, 32, 64>}, {pipeline_mode = #tpu.pipeline_mode<synchronous>, transform_indices = @transform_6, window_bounds = array<i64: 8, 64>}, {transform_indices = @transform_7, window_bounds = array<i64: 2, 8, 32>}]} {
    %c0 = arith.constant 0 : index
    %c0_0 = arith.constant 0 : index
    %c0_1 = arith.constant 0 : index
    %0 = vector.load %arg1[%c0, %c0_0, %c0_1] : memref<2x8x32xf32, #tpu.memory_space<vmem>>, vector<2x8x32xf32>
    %1 = vector.shape_cast %0 : vector<2x8x32xf32> to vector<16x32xf32>
    %2 = arith.truncf %1 : vector<16x32xf32> to vector<16x32xbf16>
    %c0_2 = arith.constant 0 : index
    %c0_3 = arith.constant 0 : index
    %c0_4 = arith.constant 0 : index
    %3 = vector.load %arg2[%c0_2, %c0_3, %c0_4] : memref<2x8x8xf32, #tpu.memory_space<vmem>>, vector<2x8x8xf32>
    %c0_5 = arith.constant 0 : index
    %c0_6 = arith.constant 0 : index
    %c0_7 = arith.constant 0 : index
    %c0_8 = arith.constant 0 : index
    %4 = vector.load %arg3[%c0_5, %c0_6, %c0_7, %c0_8] : memref<3x4x32x8xbf16, #tpu.memory_space<vmem>>, vector<3x4x32x8xbf16>
    %c0_9 = arith.constant 0 : index
    %c0_10 = arith.constant 0 : index
    %c0_11 = arith.constant 0 : index
    %c0_12 = arith.constant 0 : index
    %5 = vector.load %arg4[%c0_9, %c0_10, %c0_11, %c0_12] : memref<3x4x1x8xf32, #tpu.memory_space<vmem>>, vector<3x4x1x8xf32>
    %c0_13 = arith.constant 0 : index
    %c0_14 = arith.constant 0 : index
    %c0_15 = arith.constant 0 : index
    %6 = vector.load %arg5[%c0_13, %c0_14, %c0_15] : memref<4x8x32xbf16, #tpu.memory_space<vmem>>, vector<4x8x32xbf16>
    %c0_16 = arith.constant 0 : index
    %c0_17 = arith.constant 0 : index
    %7 = vector.load %arg7[%c0_16, %c0_17] : memref<8x64xf32, #tpu.memory_space<vmem>>, vector<8x64xf32>
    %8 = vector.extract_strided_slice %7 {offsets = [0, 0], sizes = [1, 32], strides = [1, 1]} : vector<8x64xf32> to vector<1x32xf32>
    %9 = vector.extract_strided_slice %7 {offsets = [1, 0], sizes = [1, 32], strides = [1, 1]} : vector<8x64xf32> to vector<1x32xf32>
    %10 = vector.extract_strided_slice %7 {offsets = [2, 0], sizes = [1, 32], strides = [1, 1]} : vector<8x64xf32> to vector<1x32xf32>
    %11 = vector.extract_strided_slice %7 {offsets = [3, 0], sizes = [1, 32], strides = [1, 1]} : vector<8x64xf32> to vector<1x32xf32>
    %12 = vector.extract_strided_slice %7 {offsets = [4, 0], sizes = [1, 32], strides = [1, 1]} : vector<8x64xf32> to vector<1x32xf32>
    %13 = vector.extract_strided_slice %7 {offsets = [5, 0], sizes = [1, 32], strides = [1, 1]} : vector<8x64xf32> to vector<1x32xf32>
    %14 = vector.extract_strided_slice %7 {offsets = [6, 0], sizes = [1, 64], strides = [1, 1]} : vector<8x64xf32> to vector<1x64xf32>
    %15 = vector.broadcast %8 : vector<1x32xf32> to vector<16x32xf32>
    %16 = arith.addf %1, %15 : vector<16x32xf32>
    %17 = vector.extract_strided_slice %4 {offsets = [0, 0, 0, 0], sizes = [1, 1, 32, 8], strides = [1, 1, 1, 1]} : vector<3x4x32x8xbf16> to vector<1x1x32x8xbf16>
    %18 = vector.shape_cast %17 : vector<1x1x32x8xbf16> to vector<32x8xbf16>
    %cst = arith.constant dense<0.000000e+00> : vector<16x8xf32>
    %19 = tpu.matmul %2, %18, %cst {dimension_numbers = #tpu.dot_dimension_numbers<[1], [0], [0], [1], [0, 0, 1, 1], [], []>} : vector<16x32xbf16>, vector<32x8xbf16>, vector<16x8xf32> -> vector<16x8xf32>
    %20 = vector.extract_strided_slice %5 {offsets = [0, 0, 0, 0], sizes = [1, 1, 1, 8], strides = [1, 1, 1, 1]} : vector<3x4x1x8xf32> to vector<1x1x1x8xf32>
    %21 = vector.shape_cast %20 : vector<1x1x1x8xf32> to vector<1x8xf32>
    %22 = vector.broadcast %21 : vector<1x8xf32> to vector<16x8xf32>
    %23 = arith.addf %19, %22 : vector<16x8xf32>
    %24 = vector.shape_cast %23 : vector<16x8xf32> to vector<2x8x8xf32>
    %25 = vector.extract_strided_slice %4 {offsets = [1, 0, 0, 0], sizes = [1, 1, 32, 8], strides = [1, 1, 1, 1]} : vector<3x4x32x8xbf16> to vector<1x1x32x8xbf16>
    %26 = vector.shape_cast %25 : vector<1x1x32x8xbf16> to vector<32x8xbf16>
    %cst_18 = arith.constant dense<0.000000e+00> : vector<16x8xf32>
    %27 = tpu.matmul %2, %26, %cst_18 {dimension_numbers = #tpu.dot_dimension_numbers<[1], [0], [0], [1], [0, 0, 1, 1], [], []>} : vector<16x32xbf16>, vector<32x8xbf16>, vector<16x8xf32> -> vector<16x8xf32>
    %28 = vector.extract_strided_slice %5 {offsets = [1, 0, 0, 0], sizes = [1, 1, 1, 8], strides = [1, 1, 1, 1]} : vector<3x4x1x8xf32> to vector<1x1x1x8xf32>
    %29 = vector.shape_cast %28 : vector<1x1x1x8xf32> to vector<1x8xf32>
    %30 = vector.broadcast %29 : vector<1x8xf32> to vector<16x8xf32>
    %31 = arith.addf %27, %30 : vector<16x8xf32>
    %32 = vector.shape_cast %31 : vector<16x8xf32> to vector<2x8x8xf32>
    %33 = vector.extract_strided_slice %4 {offsets = [2, 0, 0, 0], sizes = [1, 1, 32, 8], strides = [1, 1, 1, 1]} : vector<3x4x32x8xbf16> to vector<1x1x32x8xbf16>
    %34 = vector.shape_cast %33 : vector<1x1x32x8xbf16> to vector<32x8xbf16>
    %cst_19 = arith.constant dense<0.000000e+00> : vector<16x8xf32>
    %35 = tpu.matmul %2, %34, %cst_19 {dimension_numbers = #tpu.dot_dimension_numbers<[1], [0], [0], [1], [0, 0, 1, 1], [], []>} : vector<16x32xbf16>, vector<32x8xbf16>, vector<16x8xf32> -> vector<16x8xf32>
    %36 = vector.extract_strided_slice %5 {offsets = [2, 0, 0, 0], sizes = [1, 1, 1, 8], strides = [1, 1, 1, 1]} : vector<3x4x1x8xf32> to vector<1x1x1x8xf32>
    %37 = vector.shape_cast %36 : vector<1x1x1x8xf32> to vector<1x8xf32>
    %38 = vector.broadcast %37 : vector<1x8xf32> to vector<16x8xf32>
    %39 = arith.addf %35, %38 : vector<16x8xf32>
    %40 = vector.shape_cast %39 : vector<16x8xf32> to vector<2x8x8xf32>
    %41 = arith.truncf %24 : vector<2x8x8xf32> to vector<2x8x8xbf16>
    %42 = arith.truncf %32 : vector<2x8x8xf32> to vector<2x8x8xbf16>
    "tpu.trace_start"() <{level = 10 : i32, message = "bqd,bkd->bqk"}> : () -> ()
    %cst_20 = arith.constant dense<0.000000e+00> : vector<2x8x8xf32>
    %43 = tpu.matmul %41, %42, %cst_20 {dimension_numbers = #tpu.dot_dimension_numbers<[2], [2], [1], [1], [0, 0, 0, 1, 1, 1], [0], [0]>} : vector<2x8x8xbf16>, vector<2x8x8xbf16>, vector<2x8x8xf32> -> vector<2x8x8xf32>
    "tpu.trace_stop"() : () -> ()
    %cst_21 = arith.constant 0.353553385 : f32
    %44 = vector.broadcast %cst_21 : f32 to vector<2x8x8xf32>
    %45 = arith.mulf %43, %44 : vector<2x8x8xf32>
    %46 = arith.addf %45, %3 : vector<2x8x8xf32>
    %cst_22 = arith.constant dense<0xFF800000> : vector<2x8xf32>
    %47 = vector.multi_reduction <maximumf>, %46, %cst_22 [2] : vector<2x8x8xf32> to vector<2x8xf32>
    %48 = vector.shape_cast %47 : vector<2x8xf32> to vector<2x8x1xf32>
    %49 = vector.broadcast %48 : vector<2x8x1xf32> to vector<2x8x8xf32>
    %50 = arith.subf %46, %49 : vector<2x8x8xf32>
    %51 = math.exp %50 : vector<2x8x8xf32>
    %cst_23 = arith.constant dense<0.000000e+00> : vector<2x8xf32>
    %52 = vector.multi_reduction <add>, %51, %cst_23 [2] : vector<2x8x8xf32> to vector<2x8xf32>
    %53 = vector.shape_cast %52 : vector<2x8xf32> to vector<2x8x1xf32>
    %54 = tpu.reciprocal %53 {approx = true} : vector<2x8x1xf32> -> vector<2x8x1xf32>
    %55 = vector.broadcast %54 : vector<2x8x1xf32> to vector<2x8x8xf32>
    %56 = arith.mulf %51, %55 : vector<2x8x8xf32>
    %57 = arith.truncf %56 : vector<2x8x8xf32> to vector<2x8x8xbf16>
    %58 = arith.truncf %40 : vector<2x8x8xf32> to vector<2x8x8xbf16>
    "tpu.trace_start"() <{level = 10 : i32, message = "bqk,bkd->bqd"}> : () -> ()
    %cst_24 = arith.constant dense<0.000000e+00> : vector<2x8x8xf32>
    %59 = tpu.matmul %57, %58, %cst_24 {dimension_numbers = #tpu.dot_dimension_numbers<[2], [1], [1], [2], [0, 0, 0, 1, 1, 2], [0], [0]>} : vector<2x8x8xbf16>, vector<2x8x8xbf16>, vector<2x8x8xf32> -> vector<2x8x8xf32>
    "tpu.trace_stop"() : () -> ()
    %60 = vector.shape_cast %59 : vector<2x8x8xf32> to vector<16x8xf32>
    %61 = arith.truncf %60 : vector<16x8xf32> to vector<16x8xbf16>
    %62 = vector.extract_strided_slice %6 {offsets = [0, 0, 0], sizes = [1, 8, 32], strides = [1, 1, 1]} : vector<4x8x32xbf16> to vector<1x8x32xbf16>
    %63 = vector.shape_cast %62 : vector<1x8x32xbf16> to vector<8x32xbf16>
    %cst_25 = arith.constant dense<0.000000e+00> : vector<16x32xf32>
    %64 = tpu.matmul %61, %63, %cst_25 {dimension_numbers = #tpu.dot_dimension_numbers<[1], [0], [0], [1], [0, 0, 1, 1], [], []>} : vector<16x8xbf16>, vector<8x32xbf16>, vector<16x32xf32> -> vector<16x32xf32>
    %65 = arith.addf %16, %64 : vector<16x32xf32>
    %66 = vector.extract_strided_slice %4 {offsets = [0, 1, 0, 0], sizes = [1, 1, 32, 8], strides = [1, 1, 1, 1]} : vector<3x4x32x8xbf16> to vector<1x1x32x8xbf16>
    %67 = vector.shape_cast %66 : vector<1x1x32x8xbf16> to vector<32x8xbf16>
    %cst_26 = arith.constant dense<0.000000e+00> : vector<16x8xf32>
    %68 = tpu.matmul %2, %67, %cst_26 {dimension_numbers = #tpu.dot_dimension_numbers<[1], [0], [0], [1], [0, 0, 1, 1], [], []>} : vector<16x32xbf16>, vector<32x8xbf16>, vector<16x8xf32> -> vector<16x8xf32>
    %69 = vector.extract_strided_slice %5 {offsets = [0, 1, 0, 0], sizes = [1, 1, 1, 8], strides = [1, 1, 1, 1]} : vector<3x4x1x8xf32> to vector<1x1x1x8xf32>
    %70 = vector.shape_cast %69 : vector<1x1x1x8xf32> to vector<1x8xf32>
    %71 = vector.broadcast %70 : vector<1x8xf32> to vector<16x8xf32>
    %72 = arith.addf %68, %71 : vector<16x8xf32>
    %73 = vector.shape_cast %72 : vector<16x8xf32> to vector<2x8x8xf32>
    %74 = vector.extract_strided_slice %4 {offsets = [1, 1, 0, 0], sizes = [1, 1, 32, 8], strides = [1, 1, 1, 1]} : vector<3x4x32x8xbf16> to vector<1x1x32x8xbf16>
    %75 = vector.shape_cast %74 : vector<1x1x32x8xbf16> to vector<32x8xbf16>
    %cst_27 = arith.constant dense<0.000000e+00> : vector<16x8xf32>
    %76 = tpu.matmul %2, %75, %cst_27 {dimension_numbers = #tpu.dot_dimension_numbers<[1], [0], [0], [1], [0, 0, 1, 1], [], []>} : vector<16x32xbf16>, vector<32x8xbf16>, vector<16x8xf32> -> vector<16x8xf32>
    %77 = vector.extract_strided_slice %5 {offsets = [1, 1, 0, 0], sizes = [1, 1, 1, 8], strides = [1, 1, 1, 1]} : vector<3x4x1x8xf32> to vector<1x1x1x8xf32>
    %78 = vector.shape_cast %77 : vector<1x1x1x8xf32> to vector<1x8xf32>
    %79 = vector.broadcast %78 : vector<1x8xf32> to vector<16x8xf32>
    %80 = arith.addf %76, %79 : vector<16x8xf32>
    %81 = vector.shape_cast %80 : vector<16x8xf32> to vector<2x8x8xf32>
    %82 = vector.extract_strided_slice %4 {offsets = [2, 1, 0, 0], sizes = [1, 1, 32, 8], strides = [1, 1, 1, 1]} : vector<3x4x32x8xbf16> to vector<1x1x32x8xbf16>
    %83 = vector.shape_cast %82 : vector<1x1x32x8xbf16> to vector<32x8xbf16>
    %cst_28 = arith.constant dense<0.000000e+00> : vector<16x8xf32>
    %84 = tpu.matmul %2, %83, %cst_28 {dimension_numbers = #tpu.dot_dimension_numbers<[1], [0], [0], [1], [0, 0, 1, 1], [], []>} : vector<16x32xbf16>, vector<32x8xbf16>, vector<16x8xf32> -> vector<16x8xf32>
    %85 = vector.extract_strided_slice %5 {offsets = [2, 1, 0, 0], sizes = [1, 1, 1, 8], strides = [1, 1, 1, 1]} : vector<3x4x1x8xf32> to vector<1x1x1x8xf32>
    %86 = vector.shape_cast %85 : vector<1x1x1x8xf32> to vector<1x8xf32>
    %87 = vector.broadcast %86 : vector<1x8xf32> to vector<16x8xf32>
    %88 = arith.addf %84, %87 : vector<16x8xf32>
    %89 = vector.shape_cast %88 : vector<16x8xf32> to vector<2x8x8xf32>
    %90 = arith.truncf %73 : vector<2x8x8xf32> to vector<2x8x8xbf16>
    %91 = arith.truncf %81 : vector<2x8x8xf32> to vector<2x8x8xbf16>
    "tpu.trace_start"() <{level = 10 : i32, message = "bqd,bkd->bqk"}> : () -> ()
    %cst_29 = arith.constant dense<0.000000e+00> : vector<2x8x8xf32>
    %92 = tpu.matmul %90, %91, %cst_29 {dimension_numbers = #tpu.dot_dimension_numbers<[2], [2], [1], [1], [0, 0, 0, 1, 1, 1], [0], [0]>} : vector<2x8x8xbf16>, vector<2x8x8xbf16>, vector<2x8x8xf32> -> vector<2x8x8xf32>
    "tpu.trace_stop"() : () -> ()
    %cst_30 = arith.constant 0.353553385 : f32
    %93 = vector.broadcast %cst_30 : f32 to vector<2x8x8xf32>
    %94 = arith.mulf %92, %93 : vector<2x8x8xf32>
    %95 = arith.addf %94, %3 : vector<2x8x8xf32>
    %cst_31 = arith.constant dense<0xFF800000> : vector<2x8xf32>
    %96 = vector.multi_reduction <maximumf>, %95, %cst_31 [2] : vector<2x8x8xf32> to vector<2x8xf32>
    %97 = vector.shape_cast %96 : vector<2x8xf32> to vector<2x8x1xf32>
    %98 = vector.broadcast %97 : vector<2x8x1xf32> to vector<2x8x8xf32>
    %99 = arith.subf %95, %98 : vector<2x8x8xf32>
    %100 = math.exp %99 : vector<2x8x8xf32>
    %cst_32 = arith.constant dense<0.000000e+00> : vector<2x8xf32>
    %101 = vector.multi_reduction <add>, %100, %cst_32 [2] : vector<2x8x8xf32> to vector<2x8xf32>
    %102 = vector.shape_cast %101 : vector<2x8xf32> to vector<2x8x1xf32>
    %103 = tpu.reciprocal %102 {approx = true} : vector<2x8x1xf32> -> vector<2x8x1xf32>
    %104 = vector.broadcast %103 : vector<2x8x1xf32> to vector<2x8x8xf32>
    %105 = arith.mulf %100, %104 : vector<2x8x8xf32>
    %106 = arith.truncf %105 : vector<2x8x8xf32> to vector<2x8x8xbf16>
    %107 = arith.truncf %89 : vector<2x8x8xf32> to vector<2x8x8xbf16>
    "tpu.trace_start"() <{level = 10 : i32, message = "bqk,bkd->bqd"}> : () -> ()
    %cst_33 = arith.constant dense<0.000000e+00> : vector<2x8x8xf32>
    %108 = tpu.matmul %106, %107, %cst_33 {dimension_numbers = #tpu.dot_dimension_numbers<[2], [1], [1], [2], [0, 0, 0, 1, 1, 2], [0], [0]>} : vector<2x8x8xbf16>, vector<2x8x8xbf16>, vector<2x8x8xf32> -> vector<2x8x8xf32>
    "tpu.trace_stop"() : () -> ()
    %109 = vector.shape_cast %108 : vector<2x8x8xf32> to vector<16x8xf32>
    %110 = arith.truncf %109 : vector<16x8xf32> to vector<16x8xbf16>
    %111 = vector.extract_strided_slice %6 {offsets = [1, 0, 0], sizes = [1, 8, 32], strides = [1, 1, 1]} : vector<4x8x32xbf16> to vector<1x8x32xbf16>
    %112 = vector.shape_cast %111 : vector<1x8x32xbf16> to vector<8x32xbf16>
    %cst_34 = arith.constant dense<0.000000e+00> : vector<16x32xf32>
    %113 = tpu.matmul %110, %112, %cst_34 {dimension_numbers = #tpu.dot_dimension_numbers<[1], [0], [0], [1], [0, 0, 1, 1], [], []>} : vector<16x8xbf16>, vector<8x32xbf16>, vector<16x32xf32> -> vector<16x32xf32>
    %114 = arith.addf %65, %113 : vector<16x32xf32>
    %115 = vector.extract_strided_slice %4 {offsets = [0, 2, 0, 0], sizes = [1, 1, 32, 8], strides = [1, 1, 1, 1]} : vector<3x4x32x8xbf16> to vector<1x1x32x8xbf16>
    %116 = vector.shape_cast %115 : vector<1x1x32x8xbf16> to vector<32x8xbf16>
    %cst_35 = arith.constant dense<0.000000e+00> : vector<16x8xf32>
    %117 = tpu.matmul %2, %116, %cst_35 {dimension_numbers = #tpu.dot_dimension_numbers<[1], [0], [0], [1], [0, 0, 1, 1], [], []>} : vector<16x32xbf16>, vector<32x8xbf16>, vector<16x8xf32> -> vector<16x8xf32>
    %118 = vector.extract_strided_slice %5 {offsets = [0, 2, 0, 0], sizes = [1, 1, 1, 8], strides = [1, 1, 1, 1]} : vector<3x4x1x8xf32> to vector<1x1x1x8xf32>
    %119 = vector.shape_cast %118 : vector<1x1x1x8xf32> to vector<1x8xf32>
    %120 = vector.broadcast %119 : vector<1x8xf32> to vector<16x8xf32>
    %121 = arith.addf %117, %120 : vector<16x8xf32>
    %122 = vector.shape_cast %121 : vector<16x8xf32> to vector<2x8x8xf32>
    %123 = vector.extract_strided_slice %4 {offsets = [1, 2, 0, 0], sizes = [1, 1, 32, 8], strides = [1, 1, 1, 1]} : vector<3x4x32x8xbf16> to vector<1x1x32x8xbf16>
    %124 = vector.shape_cast %123 : vector<1x1x32x8xbf16> to vector<32x8xbf16>
    %cst_36 = arith.constant dense<0.000000e+00> : vector<16x8xf32>
    %125 = tpu.matmul %2, %124, %cst_36 {dimension_numbers = #tpu.dot_dimension_numbers<[1], [0], [0], [1], [0, 0, 1, 1], [], []>} : vector<16x32xbf16>, vector<32x8xbf16>, vector<16x8xf32> -> vector<16x8xf32>
    %126 = vector.extract_strided_slice %5 {offsets = [1, 2, 0, 0], sizes = [1, 1, 1, 8], strides = [1, 1, 1, 1]} : vector<3x4x1x8xf32> to vector<1x1x1x8xf32>
    %127 = vector.shape_cast %126 : vector<1x1x1x8xf32> to vector<1x8xf32>
    %128 = vector.broadcast %127 : vector<1x8xf32> to vector<16x8xf32>
    %129 = arith.addf %125, %128 : vector<16x8xf32>
    %130 = vector.shape_cast %129 : vector<16x8xf32> to vector<2x8x8xf32>
    %131 = vector.extract_strided_slice %4 {offsets = [2, 2, 0, 0], sizes = [1, 1, 32, 8], strides = [1, 1, 1, 1]} : vector<3x4x32x8xbf16> to vector<1x1x32x8xbf16>
    %132 = vector.shape_cast %131 : vector<1x1x32x8xbf16> to vector<32x8xbf16>
    %cst_37 = arith.constant dense<0.000000e+00> : vector<16x8xf32>
    %133 = tpu.matmul %2, %132, %cst_37 {dimension_numbers = #tpu.dot_dimension_numbers<[1], [0], [0], [1], [0, 0, 1, 1], [], []>} : vector<16x32xbf16>, vector<32x8xbf16>, vector<16x8xf32> -> vector<16x8xf32>
    %134 = vector.extract_strided_slice %5 {offsets = [2, 2, 0, 0], sizes = [1, 1, 1, 8], strides = [1, 1, 1, 1]} : vector<3x4x1x8xf32> to vector<1x1x1x8xf32>
    %135 = vector.shape_cast %134 : vector<1x1x1x8xf32> to vector<1x8xf32>
    %136 = vector.broadcast %135 : vector<1x8xf32> to vector<16x8xf32>
    %137 = arith.addf %133, %136 : vector<16x8xf32>
    %138 = vector.shape_cast %137 : vector<16x8xf32> to vector<2x8x8xf32>
    %139 = arith.truncf %122 : vector<2x8x8xf32> to vector<2x8x8xbf16>
    %140 = arith.truncf %130 : vector<2x8x8xf32> to vector<2x8x8xbf16>
    "tpu.trace_start"() <{level = 10 : i32, message = "bqd,bkd->bqk"}> : () -> ()
    %cst_38 = arith.constant dense<0.000000e+00> : vector<2x8x8xf32>
    %141 = tpu.matmul %139, %140, %cst_38 {dimension_numbers = #tpu.dot_dimension_numbers<[2], [2], [1], [1], [0, 0, 0, 1, 1, 1], [0], [0]>} : vector<2x8x8xbf16>, vector<2x8x8xbf16>, vector<2x8x8xf32> -> vector<2x8x8xf32>
    "tpu.trace_stop"() : () -> ()
    %cst_39 = arith.constant 0.353553385 : f32
    %142 = vector.broadcast %cst_39 : f32 to vector<2x8x8xf32>
    %143 = arith.mulf %141, %142 : vector<2x8x8xf32>
    %144 = arith.addf %143, %3 : vector<2x8x8xf32>
    %cst_40 = arith.constant dense<0xFF800000> : vector<2x8xf32>
    %145 = vector.multi_reduction <maximumf>, %144, %cst_40 [2] : vector<2x8x8xf32> to vector<2x8xf32>
    %146 = vector.shape_cast %145 : vector<2x8xf32> to vector<2x8x1xf32>
    %147 = vector.broadcast %146 : vector<2x8x1xf32> to vector<2x8x8xf32>
    %148 = arith.subf %144, %147 : vector<2x8x8xf32>
    %149 = math.exp %148 : vector<2x8x8xf32>
    %cst_41 = arith.constant dense<0.000000e+00> : vector<2x8xf32>
    %150 = vector.multi_reduction <add>, %149, %cst_41 [2] : vector<2x8x8xf32> to vector<2x8xf32>
    %151 = vector.shape_cast %150 : vector<2x8xf32> to vector<2x8x1xf32>
    %152 = tpu.reciprocal %151 {approx = true} : vector<2x8x1xf32> -> vector<2x8x1xf32>
    %153 = vector.broadcast %152 : vector<2x8x1xf32> to vector<2x8x8xf32>
    %154 = arith.mulf %149, %153 : vector<2x8x8xf32>
    %155 = arith.truncf %154 : vector<2x8x8xf32> to vector<2x8x8xbf16>
    %156 = arith.truncf %138 : vector<2x8x8xf32> to vector<2x8x8xbf16>
    "tpu.trace_start"() <{level = 10 : i32, message = "bqk,bkd->bqd"}> : () -> ()
    %cst_42 = arith.constant dense<0.000000e+00> : vector<2x8x8xf32>
    %157 = tpu.matmul %155, %156, %cst_42 {dimension_numbers = #tpu.dot_dimension_numbers<[2], [1], [1], [2], [0, 0, 0, 1, 1, 2], [0], [0]>} : vector<2x8x8xbf16>, vector<2x8x8xbf16>, vector<2x8x8xf32> -> vector<2x8x8xf32>
    "tpu.trace_stop"() : () -> ()
    %158 = vector.shape_cast %157 : vector<2x8x8xf32> to vector<16x8xf32>
    %159 = arith.truncf %158 : vector<16x8xf32> to vector<16x8xbf16>
    %160 = vector.extract_strided_slice %6 {offsets = [2, 0, 0], sizes = [1, 8, 32], strides = [1, 1, 1]} : vector<4x8x32xbf16> to vector<1x8x32xbf16>
    %161 = vector.shape_cast %160 : vector<1x8x32xbf16> to vector<8x32xbf16>
    %cst_43 = arith.constant dense<0.000000e+00> : vector<16x32xf32>
    %162 = tpu.matmul %159, %161, %cst_43 {dimension_numbers = #tpu.dot_dimension_numbers<[1], [0], [0], [1], [0, 0, 1, 1], [], []>} : vector<16x8xbf16>, vector<8x32xbf16>, vector<16x32xf32> -> vector<16x32xf32>
    %163 = arith.addf %114, %162 : vector<16x32xf32>
    %164 = vector.extract_strided_slice %4 {offsets = [0, 3, 0, 0], sizes = [1, 1, 32, 8], strides = [1, 1, 1, 1]} : vector<3x4x32x8xbf16> to vector<1x1x32x8xbf16>
    %165 = vector.shape_cast %164 : vector<1x1x32x8xbf16> to vector<32x8xbf16>
    %cst_44 = arith.constant dense<0.000000e+00> : vector<16x8xf32>
    %166 = tpu.matmul %2, %165, %cst_44 {dimension_numbers = #tpu.dot_dimension_numbers<[1], [0], [0], [1], [0, 0, 1, 1], [], []>} : vector<16x32xbf16>, vector<32x8xbf16>, vector<16x8xf32> -> vector<16x8xf32>
    %167 = vector.extract_strided_slice %5 {offsets = [0, 3, 0, 0], sizes = [1, 1, 1, 8], strides = [1, 1, 1, 1]} : vector<3x4x1x8xf32> to vector<1x1x1x8xf32>
    %168 = vector.shape_cast %167 : vector<1x1x1x8xf32> to vector<1x8xf32>
    %169 = vector.broadcast %168 : vector<1x8xf32> to vector<16x8xf32>
    %170 = arith.addf %166, %169 : vector<16x8xf32>
    %171 = vector.shape_cast %170 : vector<16x8xf32> to vector<2x8x8xf32>
    %172 = vector.extract_strided_slice %4 {offsets = [1, 3, 0, 0], sizes = [1, 1, 32, 8], strides = [1, 1, 1, 1]} : vector<3x4x32x8xbf16> to vector<1x1x32x8xbf16>
    %173 = vector.shape_cast %172 : vector<1x1x32x8xbf16> to vector<32x8xbf16>
    %cst_45 = arith.constant dense<0.000000e+00> : vector<16x8xf32>
    %174 = tpu.matmul %2, %173, %cst_45 {dimension_numbers = #tpu.dot_dimension_numbers<[1], [0], [0], [1], [0, 0, 1, 1], [], []>} : vector<16x32xbf16>, vector<32x8xbf16>, vector<16x8xf32> -> vector<16x8xf32>
    %175 = vector.extract_strided_slice %5 {offsets = [1, 3, 0, 0], sizes = [1, 1, 1, 8], strides = [1, 1, 1, 1]} : vector<3x4x1x8xf32> to vector<1x1x1x8xf32>
    %176 = vector.shape_cast %175 : vector<1x1x1x8xf32> to vector<1x8xf32>
    %177 = vector.broadcast %176 : vector<1x8xf32> to vector<16x8xf32>
    %178 = arith.addf %174, %177 : vector<16x8xf32>
    %179 = vector.shape_cast %178 : vector<16x8xf32> to vector<2x8x8xf32>
    %180 = vector.extract_strided_slice %4 {offsets = [2, 3, 0, 0], sizes = [1, 1, 32, 8], strides = [1, 1, 1, 1]} : vector<3x4x32x8xbf16> to vector<1x1x32x8xbf16>
    %181 = vector.shape_cast %180 : vector<1x1x32x8xbf16> to vector<32x8xbf16>
    %cst_46 = arith.constant dense<0.000000e+00> : vector<16x8xf32>
    %182 = tpu.matmul %2, %181, %cst_46 {dimension_numbers = #tpu.dot_dimension_numbers<[1], [0], [0], [1], [0, 0, 1, 1], [], []>} : vector<16x32xbf16>, vector<32x8xbf16>, vector<16x8xf32> -> vector<16x8xf32>
    %183 = vector.extract_strided_slice %5 {offsets = [2, 3, 0, 0], sizes = [1, 1, 1, 8], strides = [1, 1, 1, 1]} : vector<3x4x1x8xf32> to vector<1x1x1x8xf32>
    %184 = vector.shape_cast %183 : vector<1x1x1x8xf32> to vector<1x8xf32>
    %185 = vector.broadcast %184 : vector<1x8xf32> to vector<16x8xf32>
    %186 = arith.addf %182, %185 : vector<16x8xf32>
    %187 = vector.shape_cast %186 : vector<16x8xf32> to vector<2x8x8xf32>
    %188 = arith.truncf %171 : vector<2x8x8xf32> to vector<2x8x8xbf16>
    %189 = arith.truncf %179 : vector<2x8x8xf32> to vector<2x8x8xbf16>
    "tpu.trace_start"() <{level = 10 : i32, message = "bqd,bkd->bqk"}> : () -> ()
    %cst_47 = arith.constant dense<0.000000e+00> : vector<2x8x8xf32>
    %190 = tpu.matmul %188, %189, %cst_47 {dimension_numbers = #tpu.dot_dimension_numbers<[2], [2], [1], [1], [0, 0, 0, 1, 1, 1], [0], [0]>} : vector<2x8x8xbf16>, vector<2x8x8xbf16>, vector<2x8x8xf32> -> vector<2x8x8xf32>
    "tpu.trace_stop"() : () -> ()
    %cst_48 = arith.constant 0.353553385 : f32
    %191 = vector.broadcast %cst_48 : f32 to vector<2x8x8xf32>
    %192 = arith.mulf %190, %191 : vector<2x8x8xf32>
    %193 = arith.addf %192, %3 : vector<2x8x8xf32>
    %cst_49 = arith.constant dense<0xFF800000> : vector<2x8xf32>
    %194 = vector.multi_reduction <maximumf>, %193, %cst_49 [2] : vector<2x8x8xf32> to vector<2x8xf32>
    %195 = vector.shape_cast %194 : vector<2x8xf32> to vector<2x8x1xf32>
    %196 = vector.broadcast %195 : vector<2x8x1xf32> to vector<2x8x8xf32>
    %197 = arith.subf %193, %196 : vector<2x8x8xf32>
    %198 = math.exp %197 : vector<2x8x8xf32>
    %cst_50 = arith.constant dense<0.000000e+00> : vector<2x8xf32>
    %199 = vector.multi_reduction <add>, %198, %cst_50 [2] : vector<2x8x8xf32> to vector<2x8xf32>
    %200 = vector.shape_cast %199 : vector<2x8xf32> to vector<2x8x1xf32>
    %201 = tpu.reciprocal %200 {approx = true} : vector<2x8x1xf32> -> vector<2x8x1xf32>
    %202 = vector.broadcast %201 : vector<2x8x1xf32> to vector<2x8x8xf32>
    %203 = arith.mulf %198, %202 : vector<2x8x8xf32>
    %204 = arith.truncf %203 : vector<2x8x8xf32> to vector<2x8x8xbf16>
    %205 = arith.truncf %187 : vector<2x8x8xf32> to vector<2x8x8xbf16>
    "tpu.trace_start"() <{level = 10 : i32, message = "bqk,bkd->bqd"}> : () -> ()
    %cst_51 = arith.constant dense<0.000000e+00> : vector<2x8x8xf32>
    %206 = tpu.matmul %204, %205, %cst_51 {dimension_numbers = #tpu.dot_dimension_numbers<[2], [1], [1], [2], [0, 0, 0, 1, 1, 2], [0], [0]>} : vector<2x8x8xbf16>, vector<2x8x8xbf16>, vector<2x8x8xf32> -> vector<2x8x8xf32>
    "tpu.trace_stop"() : () -> ()
    %207 = vector.shape_cast %206 : vector<2x8x8xf32> to vector<16x8xf32>
    %208 = arith.truncf %207 : vector<16x8xf32> to vector<16x8xbf16>
    %209 = vector.extract_strided_slice %6 {offsets = [3, 0, 0], sizes = [1, 8, 32], strides = [1, 1, 1]} : vector<4x8x32xbf16> to vector<1x8x32xbf16>
    %210 = vector.shape_cast %209 : vector<1x8x32xbf16> to vector<8x32xbf16>
    %cst_52 = arith.constant dense<0.000000e+00> : vector<16x32xf32>
    %211 = tpu.matmul %208, %210, %cst_52 {dimension_numbers = #tpu.dot_dimension_numbers<[1], [0], [0], [1], [0, 0, 1, 1], [], []>} : vector<16x8xbf16>, vector<8x32xbf16>, vector<16x32xf32> -> vector<16x32xf32>
    %212 = arith.addf %163, %211 : vector<16x32xf32>
    %cst_53 = arith.constant dense<0.000000e+00> : vector<16xf32>
    %213 = vector.multi_reduction <add>, %212, %cst_53 [1] : vector<16x32xf32> to vector<16xf32>
    %214 = vector.shape_cast %213 : vector<16xf32> to vector<16x1xf32>
    %cst_54 = arith.constant 3.200000e+01 : f32
    %215 = vector.broadcast %cst_54 : f32 to vector<16x1xf32>
    %216 = arith.divf %214, %215 : vector<16x1xf32>
    %217 = vector.broadcast %216 : vector<16x1xf32> to vector<16x32xf32>
    %218 = arith.subf %212, %217 : vector<16x32xf32>
    %219 = arith.mulf %218, %218 : vector<16x32xf32>
    %cst_55 = arith.constant dense<0.000000e+00> : vector<16xf32>
    %220 = vector.multi_reduction <add>, %219, %cst_55 [1] : vector<16x32xf32> to vector<16xf32>
    %221 = vector.shape_cast %220 : vector<16xf32> to vector<16x1xf32>
    %cst_56 = arith.constant 3.200000e+01 : f32
    %222 = vector.broadcast %cst_56 : f32 to vector<16x1xf32>
    %223 = arith.divf %221, %222 : vector<16x1xf32>
    %cst_57 = arith.constant 9.99999996E-13 : f32
    %224 = vector.broadcast %cst_57 : f32 to vector<16x1xf32>
    %225 = arith.addf %223, %224 : vector<16x1xf32>
    %226 = math.rsqrt %225 : vector<16x1xf32>
    %227 = vector.broadcast %216 : vector<16x1xf32> to vector<16x32xf32>
    %228 = arith.subf %212, %227 : vector<16x32xf32>
    %229 = vector.broadcast %226 : vector<16x1xf32> to vector<16x32xf32>
    %230 = arith.mulf %228, %229 : vector<16x32xf32>
    %231 = vector.broadcast %9 : vector<1x32xf32> to vector<16x32xf32>
    %232 = arith.mulf %230, %231 : vector<16x32xf32>
    %233 = vector.broadcast %10 : vector<1x32xf32> to vector<16x32xf32>
    %234 = arith.addf %232, %233 : vector<16x32xf32>
    %c0_58 = arith.constant 0 : index
    %c0_59 = arith.constant 0 : index
    %c0_60 = arith.constant 0 : index
    %235 = vector.load %arg6[%c0_58, %c0_59, %c0_60] : memref<2x32x64xbf16, #tpu.memory_space<vmem>>, vector<1x32x64xbf16>
    %236 = vector.shape_cast %235 : vector<1x32x64xbf16> to vector<32x64xbf16>
    %c1 = arith.constant 1 : index
    %c0_61 = arith.constant 0 : index
    %c0_62 = arith.constant 0 : index
    %237 = vector.load %arg6[%c1, %c0_61, %c0_62] : memref<2x32x64xbf16, #tpu.memory_space<vmem>>, vector<1x32x64xbf16>
    %238 = vector.shape_cast %237 : vector<1x32x64xbf16> to vector<32x64xbf16>
    %239 = arith.truncf %234 : vector<16x32xf32> to vector<16x32xbf16>
    %cst_63 = arith.constant dense<0.000000e+00> : vector<16x64xf32>
    %240 = tpu.matmul %239, %236, %cst_63 {dimension_numbers = #tpu.dot_dimension_numbers<[1], [0], [0], [1], [0, 0, 1, 1], [], []>} : vector<16x32xbf16>, vector<32x64xbf16>, vector<16x64xf32> -> vector<16x64xf32>
    %241 = vector.broadcast %14 : vector<1x64xf32> to vector<16x64xf32>
    %242 = arith.addf %240, %241 : vector<16x64xf32>
    %cst_64 = arith.constant 5.000000e-01 : f32
    %243 = vector.broadcast %cst_64 : f32 to vector<16x64xf32>
    %244 = arith.mulf %242, %243 : vector<16x64xf32>
    %cst_65 = arith.constant 1.41421354 : f32
    %245 = vector.broadcast %cst_65 : f32 to vector<16x64xf32>
    %246 = arith.divf %242, %245 : vector<16x64xf32>
    %247 = math.erf %246 : vector<16x64xf32>
    %cst_66 = arith.constant 1.000000e+00 : f32
    %248 = vector.broadcast %cst_66 : f32 to vector<16x64xf32>
    %249 = arith.addf %248, %247 : vector<16x64xf32>
    %250 = arith.mulf %244, %249 : vector<16x64xf32>
    %251 = arith.truncf %250 : vector<16x64xf32> to vector<16x64xbf16>
    "tpu.trace_start"() <{level = 10 : i32, message = "si,hi->sh"}> : () -> ()
    %cst_67 = arith.constant dense<0.000000e+00> : vector<16x32xf32>
    %252 = tpu.matmul %251, %238, %cst_67 {dimension_numbers = #tpu.dot_dimension_numbers<[1], [1], [0], [0], [0, 0, 1, 0], [], []>} : vector<16x64xbf16>, vector<32x64xbf16>, vector<16x32xf32> -> vector<16x32xf32>
    "tpu.trace_stop"() : () -> ()
    %253 = vector.broadcast %11 : vector<1x32xf32> to vector<16x32xf32>
    %254 = arith.addf %252, %253 : vector<16x32xf32>
    %255 = arith.addf %254, %234 : vector<16x32xf32>
    %cst_68 = arith.constant dense<0.000000e+00> : vector<16xf32>
    %256 = vector.multi_reduction <add>, %255, %cst_68 [1] : vector<16x32xf32> to vector<16xf32>
    %257 = vector.shape_cast %256 : vector<16xf32> to vector<16x1xf32>
    %cst_69 = arith.constant 3.200000e+01 : f32
    %258 = vector.broadcast %cst_69 : f32 to vector<16x1xf32>
    %259 = arith.divf %257, %258 : vector<16x1xf32>
    %260 = vector.broadcast %259 : vector<16x1xf32> to vector<16x32xf32>
    %261 = arith.subf %255, %260 : vector<16x32xf32>
    %262 = arith.mulf %261, %261 : vector<16x32xf32>
    %cst_70 = arith.constant dense<0.000000e+00> : vector<16xf32>
    %263 = vector.multi_reduction <add>, %262, %cst_70 [1] : vector<16x32xf32> to vector<16xf32>
    %264 = vector.shape_cast %263 : vector<16xf32> to vector<16x1xf32>
    %cst_71 = arith.constant 3.200000e+01 : f32
    %265 = vector.broadcast %cst_71 : f32 to vector<16x1xf32>
    %266 = arith.divf %264, %265 : vector<16x1xf32>
    %cst_72 = arith.constant 9.99999996E-13 : f32
    %267 = vector.broadcast %cst_72 : f32 to vector<16x1xf32>
    %268 = arith.addf %266, %267 : vector<16x1xf32>
    %269 = math.rsqrt %268 : vector<16x1xf32>
    %270 = vector.broadcast %259 : vector<16x1xf32> to vector<16x32xf32>
    %271 = arith.subf %255, %270 : vector<16x32xf32>
    %272 = vector.broadcast %269 : vector<16x1xf32> to vector<16x32xf32>
    %273 = arith.mulf %271, %272 : vector<16x32xf32>
    %274 = vector.broadcast %12 : vector<1x32xf32> to vector<16x32xf32>
    %275 = arith.mulf %273, %274 : vector<16x32xf32>
    %276 = vector.broadcast %13 : vector<1x32xf32> to vector<16x32xf32>
    %277 = arith.addf %275, %276 : vector<16x32xf32>
    %278 = vector.shape_cast %277 : vector<16x32xf32> to vector<2x8x32xf32>
    %c0_73 = arith.constant 0 : index
    %c0_74 = arith.constant 0 : index
    %c0_75 = arith.constant 0 : index
    %279 = vector.load %arg8[%c0_73, %c0_74, %c0_75] : memref<2x8x32xf32, #tpu.memory_space<vmem>>, vector<2x8x32xf32>
    tpu.vector_store %arg8[%c0_73, %c0_74, %c0_75], %278 {strides = array<i32>} : memref<2x8x32xf32, #tpu.memory_space<vmem>>, vector<2x8x32xf32>,
    return
  }
  func.func @transform_0(%arg0: i32) -> (i32, i32, i32) {
    %c0_i32 = arith.constant 0 : i32
    %c0_i32_0 = arith.constant 0 : i32
    %c0_i32_1 = arith.constant 0 : i32
    return %arg0, %c0_i32, %c0_i32_0 : i32, i32, i32
  }
  func.func @transform_1(%arg0: i32) -> (i32, i32, i32) {
    %c0_i32 = arith.constant 0 : i32
    %c0_i32_0 = arith.constant 0 : i32
    %c0_i32_1 = arith.constant 0 : i32
    return %arg0, %c0_i32, %c0_i32_0 : i32, i32, i32
  }
  func.func @transform_2(%arg0: i32) -> (i32, i32, i32, i32) {
    %c0_i32 = arith.constant 0 : i32
    %c0_i32_0 = arith.constant 0 : i32
    %c0_i32_1 = arith.constant 0 : i32
    %c0_i32_2 = arith.constant 0 : i32
    %c0_i32_3 = arith.constant 0 : i32
    return %c0_i32, %c0_i32_0, %c0_i32_1, %c0_i32_2 : i32, i32, i32, i32
  }
  func.func @transform_3(%arg0: i32) -> (i32, i32, i32, i32) {
    %c0_i32 = arith.constant 0 : i32
    %c0_i32_0 = arith.constant 0 : i32
    %c0_i32_1 = arith.constant 0 : i32
    %c0_i32_2 = arith.constant 0 : i32
    %c0_i32_3 = arith.constant 0 : i32
    return %c0_i32, %c0_i32_0, %c0_i32_1, %c0_i32_2 : i32, i32, i32, i32
  }
  func.func @transform_4(%arg0: i32) -> (i32, i32, i32) {
    %c0_i32 = arith.constant 0 : i32
    %c0_i32_0 = arith.constant 0 : i32
    %c0_i32_1 = arith.constant 0 : i32
    %c0_i32_2 = arith.constant 0 : i32
    return %c0_i32, %c0_i32_0, %c0_i32_1 : i32, i32, i32
  }
  func.func @transform_5(%arg0: i32) -> (i32, i32, i32) {
    %c0_i32 = arith.constant 0 : i32
    %c0_i32_0 = arith.constant 0 : i32
    %c0_i32_1 = arith.constant 0 : i32
    %c0_i32_2 = arith.constant 0 : i32
    return %c0_i32, %c0_i32_0, %c0_i32_1 : i32, i32, i32
  }
  func.func @transform_6(%arg0: i32) -> (i32, i32) {
    %c0_i32 = arith.constant 0 : i32
    %c0_i32_0 = arith.constant 0 : i32
    %c0_i32_1 = arith.constant 0 : i32
    return %c0_i32, %c0_i32_0 : i32, i32
  }
  func.func @transform_7(%arg0: i32) -> (i32, i32, i32) {
    %c0_i32 = arith.constant 0 : i32
    %c0_i32_0 = arith.constant 0 : i32
    %c0_i32_1 = arith.constant 0 : i32
    return %arg0, %c0_i32, %c0_i32_0 : i32, i32, i32
  }
}

</mosaic_0001>

<llo_original>
// kernel: bert_layer.1
$region0: #{bert_layer.1}
  #allocation0 [shape = 'u32[]', space=smem, size = 0x4, offset = 0x4, fixed_abs, tag = 'smem constant byte address 0x4 - core index']
  #allocation1 [shape = 'u32[72,128]{1,0:T(1,128)}', space=vmem, size = 0x9000, scoped, tag = 'internal scratch']
  %s0 = inlined_call_operand.vmem [shape: f32[2,8,32], index: 0, kind: input, shape index: {}]
  %s1 = inlined_call_operand.vmem [shape: f32[2,8,8], index: 1, kind: input, shape index: {}]
  %s2 = inlined_call_operand.vmem [shape: bf16[3,4,32,8], index: 2, kind: input, shape index: {}]
  %s3 = inlined_call_operand.vmem [shape: f32[3,4,1,8], index: 3, kind: input, shape index: {}]
  %s4 = inlined_call_operand.vmem [shape: bf16[4,8,32], index: 4, kind: input, shape index: {}]
  %s5 = inlined_call_operand.vmem [shape: bf16[2,32,64], index: 5, kind: input, shape index: {}]
  %s6 = inlined_call_operand.vmem [shape: f32[8,64], index: 6, kind: input, shape index: {}]
  %s7 = inlined_call_operand.hbm [shape: f32[2,8,32], index: 7, kind: output, shape index: {}]
  %s8 = sld [smem:[#allocation0]]
  $region38: #{bert_layer.1} parent=0
    _
  %s10 = ssub.s32 1, %s8
  %s11 = scalar_select 0, %s10, %s8
  $region1: #{bert_layer.1} parent=0
    #allocation2 [shape = 'u8[8192]{0}', space=vmem, size = 0x2000, scoped, tag = 'output window, operand 0, single buffered']
    #allocation3 [shape = 's32[1]{0}', space=sflag, size = 0x4, scoped, tag = 'scoped memory for bert_layer.1']
    %12 = vsyncpa [#allocation3], 0
    // Predicated region
    $region2: #{bert_layer.1} parent=1 // pred_check
      _
    $region3: #{bert_layer.1} parent=1 // pred_check_branch
      %14 = sbr.rel (0) target = $region5
    $region4: #{bert_layer.1} parent=1 // pred_region
      _
    $region5: #{bert_layer.1} parent=1 // pred_fallthru
      _
    // Predicated region
    $region6: #{bert_layer.1} parent=1 // pred_check
      _
    $region7: #{bert_layer.1} parent=1 // pred_check_branch
      %16 = sbr.rel (0) target = $region9
    $region8: #{bert_layer.1} parent=1 // pred_region
      _
    $region9: #{bert_layer.1} parent=1 // pred_fallthru
      _
    // Predicated region
    $region10: #{bert_layer.1} parent=1 // pred_check
      _
    $region11: #{bert_layer.1} parent=1 // pred_check_branch
      %18 = sbr.rel (0) target = $region13
    $region12: #{bert_layer.1} parent=1 // pred_region
      _
    $region13: #{bert_layer.1} parent=1 // pred_fallthru
      _
    // Predicated region
    $region14: #{bert_layer.1} parent=1 // pred_check
      _
    $region15: #{bert_layer.1} parent=1 // pred_check_branch
      %20 = sbr.rel (0) target = $region17
    $region16: #{bert_layer.1} parent=1 // pred_region
      _
    $region17: #{bert_layer.1} parent=1 // pred_fallthru
      _
    // Predicated region
    $region18: #{bert_layer.1} parent=1 // pred_check
      _
    $region19: #{bert_layer.1} parent=1 // pred_check_branch
      %22 = sbr.rel (0) target = $region21
    $region20: #{bert_layer.1} parent=1 // pred_region
      _
    $region21: #{bert_layer.1} parent=1 // pred_fallthru
      _
    // Predicated region
    $region22: #{bert_layer.1} parent=1 // pred_check
      _
    $region23: #{bert_layer.1} parent=1 // pred_check_branch
      %24 = sbr.rel (0) target = $region25
    $region24: #{bert_layer.1} parent=1 // pred_region
      _
    $region25: #{bert_layer.1} parent=1 // pred_fallthru
      _
    // Predicated region
    $region26: #{bert_layer.1} parent=1 // pred_check
      _
    $region27: #{bert_layer.1} parent=1 // pred_check_branch
      %26 = sbr.rel (0) target = $region29
    $region28: #{bert_layer.1} parent=1 // pred_region
      _
    $region29: #{bert_layer.1} parent=1 // pred_fallthru
      _
    %v28 = vld [vmem:[%s0] sm:$0xff]
    %v29 = vld [vmem:[%s0 + $0x8] sm:$0xff]
    %v30 = vpack.c.bf16 %v29, %v28
    %v31 = vld [vmem:[%s1] sm:$0xff]
    %v32 = vld [vmem:[%s1 + $0x8] sm:$0xff]
    %v33 = vld [vmem:[%s2] sm:$0xf]
    %v34 = vld [vmem:[%s2 + $0x4] sm:$0xf]
    %v35 = vld [vmem:[%s2 + $0x8] sm:$0xf]
    %v36 = vld [vmem:[%s2 + $0xc] sm:$0xf]
    %v37 = vld [vmem:[%s2 + $0x10] sm:$0xf]
    %v38 = vld [vmem:[%s2 + $0x14] sm:$0xf]
    %v39 = vld [vmem:[%s2 + $0x18] sm:$0xf]
    %v40 = vld [vmem:[%s2 + $0x1c] sm:$0xf]
    %v41 = vld [vmem:[%s2 + $0x20] sm:$0xf]
    %v42 = vld [vmem:[%s2 + $0x24] sm:$0xf]
    %v43 = vld [vmem:[%s2 + $0x28] sm:$0xf]
    %v44 = vld [vmem:[%s2 + $0x2c] sm:$0xf]
    %v45 = vld [vmem:[%s2 + $0x30] sm:$0xf]
    %v46 = vld [vmem:[%s2 + $0x34] sm:$0xf]
    %v47 = vld [vmem:[%s2 + $0x38] sm:$0xf]
    %v48 = vld [vmem:[%s2 + $0x3c] sm:$0xf]
    %v49 = vld [vmem:[%s2 + $0x40] sm:$0xf]
    %v50 = vld [vmem:[%s2 + $0x44] sm:$0xf]
    %v51 = vld [vmem:[%s2 + $0x48] sm:$0xf]
    %v52 = vld [vmem:[%s2 + $0x4c] sm:$0xf]
    %v53 = vld [vmem:[%s2 + $0x50] sm:$0xf]
    %v54 = vld [vmem:[%s2 + $0x54] sm:$0xf]
    %v55 = vld [vmem:[%s2 + $0x58] sm:$0xf]
    %v56 = vld [vmem:[%s2 + $0x5c] sm:$0xf]
    %v57 = vld [vmem:[%s2 + $0x60] sm:$0xf]
    %v58 = vld [vmem:[%s2 + $0x64] sm:$0xf]
    %v59 = vld [vmem:[%s2 + $0x68] sm:$0xf]
    %v60 = vld [vmem:[%s2 + $0x6c] sm:$0xf]
    %v61 = vld [vmem:[%s2 + $0x70] sm:$0xf]
    %v62 = vld [vmem:[%s2 + $0x74] sm:$0xf]
    %v63 = vld [vmem:[%s2 + $0x78] sm:$0xf]
    %v64 = vld [vmem:[%s2 + $0x7c] sm:$0xf]
    %v65 = vld [vmem:[%s2 + $0x80] sm:$0xf]
    %v66 = vld [vmem:[%s2 + $0x84] sm:$0xf]
    %v67 = vld [vmem:[%s2 + $0x88] sm:$0xf]
    %v68 = vld [vmem:[%s2 + $0x8c] sm:$0xf]
    %v69 = vld [vmem:[%s2 + $0x90] sm:$0xf]
    %v70 = vld [vmem:[%s2 + $0x94] sm:$0xf]
    %v71 = vld [vmem:[%s2 + $0x98] sm:$0xf]
    %v72 = vld [vmem:[%s2 + $0x9c] sm:$0xf]
    %v73 = vld [vmem:[%s2 + $0xa0] sm:$0xf]
    %v74 = vld [vmem:[%s2 + $0xa4] sm:$0xf]
    %v75 = vld [vmem:[%s2 + $0xa8] sm:$0xf]
    %v76 = vld [vmem:[%s2 + $0xac] sm:$0xf]
    %v77 = vld [vmem:[%s2 + $0xb0] sm:$0xf]
    %v78 = vld [vmem:[%s2 + $0xb4] sm:$0xf]
    %v79 = vld [vmem:[%s2 + $0xb8] sm:$0xf]
    %v80 = vld [vmem:[%s2 + $0xbc] sm:$0xf]
    %v81 = vld [vmem:[%s3] sm:$0x1]
    %v82 = vld [vmem:[%s3 + $0x1] sm:$0x1]
    %v83 = vld [vmem:[%s3 + $0x2] sm:$0x1]
    %v84 = vld [vmem:[%s3 + $0x3] sm:$0x1]
    %v85 = vld [vmem:[%s3 + $0x4] sm:$0x1]
    %v86 = vld [vmem:[%s3 + $0x5] sm:$0x1]
    %v87 = vld [vmem:[%s3 + $0x6] sm:$0x1]
    %v88 = vld [vmem:[%s3 + $0x7] sm:$0x1]
    %v89 = vld [vmem:[%s3 + $0x8] sm:$0x1]
    %v90 = vld [vmem:[%s3 + $0x9] sm:$0x1]
    %v91 = vld [vmem:[%s3 + $0xa] sm:$0x1]
    %v92 = vld [vmem:[%s3 + $0xb] sm:$0x1]
    %v93 = vld [vmem:[%s4] sm:$0xf]
    %v94 = vld [vmem:[%s4 + $0x4] sm:$0xf]
    %v95 = vld [vmem:[%s4 + $0x8] sm:$0xf]
    %v96 = vld [vmem:[%s4 + $0xc] sm:$0xf]
    %v97 = vld [vmem:[%s6] sm:$0xff]
    %v98 = vperm.slane %v97, 0
    %v99 = vadd.f32 %v28, %v98
    %v100 = vadd.f32 %v29, %v98
    %v102 = vperm.slane %v81, 0
    %v108 = vunpack.c.l.b16 %v33
    %v109 = vunpack.c.l.b16 %v34
    %v110 = vunpack.c.l.b16 %v35
    %v111 = vunpack.c.l.b16 %v36
    %v112 = vpack.c.b16 %v109, %v108
    %v113 = vpack.c.b16 %v111, %v110
    %vm116 = vcmask 261120
    %v118 = vsel %vm116, %v30, 0
    %120 = vmatpush.bf16.msra.mxu0 0
    %121 = vmatpush.bf16.msra.mxu0 0
    %122 = vmatpush.bf16.msra.mxu0 0
    %123 = vmatpush.bf16.msra.mxu0 0
    %124 = vmatpush.bf16.msra.mxu0 0
    %125 = vmatpush.bf16.msra.mxu0 0
    %126 = vmatpush.bf16.msra.mxu0 %v113
    %127 = vmatpush.bf16.msra.mxu0 %v112
    %128 = vmatmul.bf16.gmra.mxu0 %v118
    %v129 = vpop.f32.mrf.mxu0
    %v130 = vadd.f32 %v102, %v129
    %v131 = vpop.f32.mrf.mxu0
    %v132 = vadd.f32 %v102, %v131
    %133 = vdwg.mxu0
    %v135 = vperm.slane %v85, 0
    %v141 = vunpack.c.l.b16 %v49
    %v142 = vunpack.c.l.b16 %v50
    %v143 = vunpack.c.l.b16 %v51
    %v144 = vunpack.c.l.b16 %v52
    %v145 = vpack.c.b16 %v142, %v141
    %v146 = vpack.c.b16 %v144, %v143
    %149 = vmatpush.bf16.msra.mxu0 0
    %150 = vmatpush.bf16.msra.mxu0 0
    %151 = vmatpush.bf16.msra.mxu0 0
    %152 = vmatpush.bf16.msra.mxu0 0
    %153 = vmatpush.bf16.msra.mxu0 0
    %154 = vmatpush.bf16.msra.mxu0 0
    %155 = vmatpush.bf16.msra.mxu0 %v146
    %156 = vmatpush.bf16.msra.mxu0 %v145
    %157 = vmatmul.bf16.gmra.mxu0 %v118
    %v158 = vpop.f32.mrf.mxu0
    %v159 = vadd.f32 %v135, %v158
    %v160 = vpop.f32.mrf.mxu0
    %v161 = vadd.f32 %v135, %v160
    %162 = vdwg.mxu0
    %v164 = vperm.slane %v89, 0
    %v170 = vunpack.c.l.b16 %v65
    %v171 = vunpack.c.l.b16 %v66
    %v172 = vunpack.c.l.b16 %v67
    %v173 = vunpack.c.l.b16 %v68
    %v174 = vpack.c.b16 %v171, %v170
    %v175 = vpack.c.b16 %v173, %v172
    %178 = vmatpush.bf16.msra.mxu0 0
    %179 = vmatpush.bf16.msra.mxu0 0
    %180 = vmatpush.bf16.msra.mxu0 0
    %181 = vmatpush.bf16.msra.mxu0 0
    %182 = vmatpush.bf16.msra.mxu0 0
    %183 = vmatpush.bf16.msra.mxu0 0
    %184 = vmatpush.bf16.msra.mxu0 %v175
    %185 = vmatpush.bf16.msra.mxu0 %v174
    %186 = vmatmul.bf16.gmra.mxu0 %v118
    %v187 = vpop.f32.mrf.mxu0
    %v188 = vadd.f32 %v164, %v187
    %v189 = vpop.f32.mrf.mxu0
    %v190 = vadd.f32 %v164, %v189
    %191 = vdwg.mxu0
    %v192 = vpack.c.bf16 %v130, %v130
    %v193 = vpack.c.bf16 %v132, %v132
    %v194 = vpack.c.bf16 %v159, %v159
    %v195 = vpack.c.bf16 %v161, %v161
    %vm196 = vcmask 64512
    %v198 = vsel %vm196, %v192, 0
    %v201 = vsel %vm196, %v194, 0
    %203 = vmatpush.bf16.xpose.msra.mxu0 0
    %204 = vmatpush.bf16.xpose.msra.mxu0 0
    %205 = vmatpush.bf16.xpose.msra.mxu0 0
    %206 = vmatpush.bf16.xpose.msra.mxu0 0
    %207 = vmatpush.bf16.xpose.msra.mxu0 0
    %208 = vmatpush.bf16.xpose.msra.mxu0 0
    %209 = vmatpush.bf16.xpose.msra.mxu0 0
    %210 = vmatpush.bf16.xpose.msra.mxu0 %v201
    %211 = vmatmul.bf16.gmra.mxu0 %v198
    %v212 = vpop.f32.mrf.mxu0
    %v213 = vadd.f32 0.0, %v212
    %v214 = vpop.f32.mrf.mxu0
    %215 = vdwg.mxu0
    %v217 = vsel %vm196, %v193, 0
    %v220 = vsel %vm196, %v195, 0
    %222 = vmatpush.bf16.xpose.msra.mxu0 0
    %223 = vmatpush.bf16.xpose.msra.mxu0 0
    %224 = vmatpush.bf16.xpose.msra.mxu0 0
    %225 = vmatpush.bf16.xpose.msra.mxu0 0
    %226 = vmatpush.bf16.xpose.msra.mxu0 0
    %227 = vmatpush.bf16.xpose.msra.mxu0 0
    %228 = vmatpush.bf16.xpose.msra.mxu0 0
    %229 = vmatpush.bf16.xpose.msra.mxu0 %v220
    %230 = vmatmul.bf16.gmra.mxu0 %v217
    %v231 = vpop.f32.mrf.mxu0
    %v232 = vadd.f32 0.0, %v231
    %v233 = vpop.f32.mrf.mxu0
    %234 = vdwg.mxu0
    %v235 = vmul.f32 %v213, 0.35355338
    %v236 = vmul.f32 %v232, 0.35355338
    %v237 = vadd.f32 %v235, %v31
    %v238 = vadd.f32 %v236, %v32
    %v239 = vsel %vm196, %v237, -inf
    %240 = vmax.xlane.f32.xlu0 %v239
    %v241 = vpop.xlane.xlu0 %240
    %v242 = vsel %vm196, %v238, -inf
    %243 = vmax.xlane.f32.xlu0 %v242
    %v244 = vpop.xlane.xlu0 %243
    %v245 = vsub.f32 %v237, %v241
    %v246 = vsub.f32 %v238, %v244
    %v247 = vmul.f32 %v245, 1.442695
    %v248 = vpow.pop %v247
    %v249 = vmul.f32 %v246, 1.442695
    %v250 = vpow.pop %v249
    %v251 = vsel %vm196, %v248, 0.0
    %252 = vadd.xlane.f32.xlu0 %v251
    %v253 = vpop.xlane.xlu0 %252
    %v254 = vsel %vm196, %v250, 0.0
    %255 = vadd.xlane.f32.xlu0 %v254
    %v256 = vpop.xlane.xlu0 %255
    %v257 = vrcp.pop %v253
    %v258 = vrcp.pop %v256
    %v259 = vmul.f32 %v248, %v257
    %v260 = vmul.f32 %v250, %v258
    %v261 = vpack.c.bf16 %v259, %v259
    %v262 = vpack.c.bf16 %v260, %v260
    %v263 = vpack.c.bf16 %v188, %v188
    %v264 = vpack.c.bf16 %v190, %v190
    %v266 = vsel %vm196, %v261, 0
    %vm268 = vcmask 1043456
    %v270 = vsel %vm268, %v263, 0
    %272 = vmatpush.bf16.msra.mxu0 0
    %273 = vmatpush.bf16.msra.mxu0 0
    %274 = vmatpush.bf16.msra.mxu0 0
    %275 = vmatpush.bf16.msra.mxu0 0
    %276 = vmatpush.bf16.msra.mxu0 0
    %277 = vmatpush.bf16.msra.mxu0 0
    %278 = vmatpush.bf16.msra.mxu0 0
    %279 = vmatpush.bf16.msra.mxu0 %v270
    %280 = vmatmul.bf16.gmra.mxu0 %v266
    %v281 = vpop.f32.mrf.mxu0
    %v282 = vadd.f32 0.0, %v281
    %v283 = vpop.f32.mrf.mxu0
    %284 = vdwg.mxu0
    %v286 = vsel %vm196, %v262, 0
    %v289 = vsel %vm268, %v264, 0
    %291 = vmatpush.bf16.msra.mxu0 0
    %292 = vmatpush.bf16.msra.mxu0 0
    %293 = vmatpush.bf16.msra.mxu0 0
    %294 = vmatpush.bf16.msra.mxu0 0
    %295 = vmatpush.bf16.msra.mxu0 0
    %296 = vmatpush.bf16.msra.mxu0 0
    %297 = vmatpush.bf16.msra.mxu0 0
    %298 = vmatpush.bf16.msra.mxu0 %v289
    %299 = vmatmul.bf16.gmra.mxu0 %v286
    %v300 = vpop.f32.mrf.mxu0
    %v301 = vadd.f32 0.0, %v300
    %v302 = vpop.f32.mrf.mxu0
    %303 = vdwg.mxu0
    %v304 = vpack.c.bf16 %v301, %v282
    %v306 = vsel %vm196, %v304, 0
    %v309 = vsel %vm268, %v93, 0
    %311 = vmatpush.bf16.msra.mxu0 0
    %312 = vmatpush.bf16.msra.mxu0 0
    %313 = vmatpush.bf16.msra.mxu0 0
    %314 = vmatpush.bf16.msra.mxu0 0
    %315 = vmatpush.bf16.msra.mxu0 0
    %316 = vmatpush.bf16.msra.mxu0 0
    %317 = vmatpush.bf16.msra.mxu0 0
    %318 = vmatpush.bf16.msra.mxu0 %v309
    %319 = vmatmul.bf16.gmra.mxu0 %v306
    %v320 = vpop.f32.mrf.mxu0
    %v321 = vadd.f32 0.0, %v320
    %v322 = vpop.f32.mrf.mxu0
    %v323 = vadd.f32 0.0, %v322
    %324 = vdwg.mxu0
    %v325 = vadd.f32 %v99, %v321
    %v326 = vadd.f32 %v100, %v323
    %v328 = vperm.slane %v82, 0
    %v334 = vunpack.c.l.b16 %v37
    %v335 = vunpack.c.l.b16 %v38
    %v336 = vunpack.c.l.b16 %v39
    %v337 = vunpack.c.l.b16 %v40
    %v338 = vpack.c.b16 %v335, %v334
    %v339 = vpack.c.b16 %v337, %v336
    %342 = vmatpush.bf16.msra.mxu0 0
    %343 = vmatpush.bf16.msra.mxu0 0
    %344 = vmatpush.bf16.msra.mxu0 0
    %345 = vmatpush.bf16.msra.mxu0 0
    %346 = vmatpush.bf16.msra.mxu0 0
    %347 = vmatpush.bf16.msra.mxu0 0
    %348 = vmatpush.bf16.msra.mxu0 %v339
    %349 = vmatpush.bf16.msra.mxu0 %v338
    %350 = vmatmul.bf16.gmra.mxu0 %v118
    %v351 = vpop.f32.mrf.mxu0
    %v352 = vadd.f32 %v328, %v351
    %v353 = vpop.f32.mrf.mxu0
    %v354 = vadd.f32 %v328, %v353
    %355 = vdwg.mxu0
    %v357 = vperm.slane %v86, 0
    %v363 = vunpack.c.l.b16 %v53
    %v364 = vunpack.c.l.b16 %v54
    %v365 = vunpack.c.l.b16 %v55
    %v366 = vunpack.c.l.b16 %v56
    %v367 = vpack.c.b16 %v364, %v363
    %v368 = vpack.c.b16 %v366, %v365
    %371 = vmatpush.bf16.msra.mxu0 0
    %372 = vmatpush.bf16.msra.mxu0 0
    %373 = vmatpush.bf16.msra.mxu0 0
    %374 = vmatpush.bf16.msra.mxu0 0
    %375 = vmatpush.bf16.msra.mxu0 0
    %376 = vmatpush.bf16.msra.mxu0 0
    %377 = vmatpush.bf16.msra.mxu0 %v368
    %378 = vmatpush.bf16.msra.mxu0 %v367
    %379 = vmatmul.bf16.gmra.mxu0 %v118
    %v380 = vpop.f32.mrf.mxu0
    %v381 = vadd.f32 %v357, %v380
    %v382 = vpop.f32.mrf.mxu0
    %v383 = vadd.f32 %v357, %v382
    %384 = vdwg.mxu0
    %v386 = vperm.slane %v90, 0
    %v392 = vunpack.c.l.b16 %v69
    %v393 = vunpack.c.l.b16 %v70
    %v394 = vunpack.c.l.b16 %v71
    %v395 = vunpack.c.l.b16 %v72
    %v396 = vpack.c.b16 %v393, %v392
    %v397 = vpack.c.b16 %v395, %v394
    %400 = vmatpush.bf16.msra.mxu0 0
    %401 = vmatpush.bf16.msra.mxu0 0
    %402 = vmatpush.bf16.msra.mxu0 0
    %403 = vmatpush.bf16.msra.mxu0 0
    %404 = vmatpush.bf16.msra.mxu0 0
    %405 = vmatpush.bf16.msra.mxu0 0
    %406 = vmatpush.bf16.msra.mxu0 %v397
    %407 = vmatpush.bf16.msra.mxu0 %v396
    %408 = vmatmul.bf16.gmra.mxu0 %v118
    %v409 = vpop.f32.mrf.mxu0
    %v410 = vadd.f32 %v386, %v409
    %v411 = vpop.f32.mrf.mxu0
    %v412 = vadd.f32 %v386, %v411
    %413 = vdwg.mxu0
    %v414 = vpack.c.bf16 %v352, %v352
    %v415 = vpack.c.bf16 %v354, %v354
    %v416 = vpack.c.bf16 %v381, %v381
    %v417 = vpack.c.bf16 %v383, %v383
    %v419 = vsel %vm196, %v414, 0
    %v422 = vsel %vm196, %v416, 0
    %424 = vmatpush.bf16.xpose.msra.mxu0 0
    %425 = vmatpush.bf16.xpose.msra.mxu0 0
    %426 = vmatpush.bf16.xpose.msra.mxu0 0
    %427 = vmatpush.bf16.xpose.msra.mxu0 0
    %428 = vmatpush.bf16.xpose.msra.mxu0 0
    %429 = vmatpush.bf16.xpose.msra.mxu0 0
    %430 = vmatpush.bf16.xpose.msra.mxu0 0
    %431 = vmatpush.bf16.xpose.msra.mxu0 %v422
    %432 = vmatmul.bf16.gmra.mxu0 %v419
    %v433 = vpop.f32.mrf.mxu0
    %v434 = vadd.f32 0.0, %v433
    %v435 = vpop.f32.mrf.mxu0
    %436 = vdwg.mxu0
    %v438 = vsel %vm196, %v415, 0
    %v441 = vsel %vm196, %v417, 0
    %443 = vmatpush.bf16.xpose.msra.mxu0 0
    %444 = vmatpush.bf16.xpose.msra.mxu0 0
    %445 = vmatpush.bf16.xpose.msra.mxu0 0
    %446 = vmatpush.bf16.xpose.msra.mxu0 0
    %447 = vmatpush.bf16.xpose.msra.mxu0 0
    %448 = vmatpush.bf16.xpose.msra.mxu0 0
    %449 = vmatpush.bf16.xpose.msra.mxu0 0
    %450 = vmatpush.bf16.xpose.msra.mxu0 %v441
    %451 = vmatmul.bf16.gmra.mxu0 %v438
    %v452 = vpop.f32.mrf.mxu0
    %v453 = vadd.f32 0.0, %v452
    %v454 = vpop.f32.mrf.mxu0
    %455 = vdwg.mxu0
    %v456 = vmul.f32 %v434, 0.35355338
    %v457 = vmul.f32 %v453, 0.35355338
    %v458 = vadd.f32 %v456, %v31
    %v459 = vadd.f32 %v457, %v32
    %v460 = vsel %vm196, %v458, -inf
    %461 = vmax.xlane.f32.xlu0 %v460
    %v462 = vpop.xlane.xlu0 %461
    %v463 = vsel %vm196, %v459, -inf
    %464 = vmax.xlane.f32.xlu0 %v463
    %v465 = vpop.xlane.xlu0 %464
    %v466 = vsub.f32 %v458, %v462
    %v467 = vsub.f32 %v459, %v465
    %v468 = vmul.f32 %v466, 1.442695
    %v469 = vpow.pop %v468
    %v470 = vmul.f32 %v467, 1.442695
    %v471 = vpow.pop %v470
    %v472 = vsel %vm196, %v469, 0.0
    %473 = vadd.xlane.f32.xlu0 %v472
    %v474 = vpop.xlane.xlu0 %473
    %v475 = vsel %vm196, %v471, 0.0
    %476 = vadd.xlane.f32.xlu0 %v475
    %v477 = vpop.xlane.xlu0 %476
    %v478 = vrcp.pop %v474
    %v479 = vrcp.pop %v477
    %v480 = vmul.f32 %v469, %v478
    %v481 = vmul.f32 %v471, %v479
    %v482 = vpack.c.bf16 %v480, %v480
    %v483 = vpack.c.bf16 %v481, %v481
    %v484 = vpack.c.bf16 %v410, %v410
    %v485 = vpack.c.bf16 %v412, %v412
    %v487 = vsel %vm196, %v482, 0
    %v490 = vsel %vm268, %v484, 0
    %492 = vmatpush.bf16.msra.mxu0 0
    %493 = vmatpush.bf16.msra.mxu0 0
    %494 = vmatpush.bf16.msra.mxu0 0
    %495 = vmatpush.bf16.msra.mxu0 0
    %496 = vmatpush.bf16.msra.mxu0 0
    %497 = vmatpush.bf16.msra.mxu0 0
    %498 = vmatpush.bf16.msra.mxu0 0
    %499 = vmatpush.bf16.msra.mxu0 %v490
    %500 = vmatmul.bf16.gmra.mxu0 %v487
    %v501 = vpop.f32.mrf.mxu0
    %v502 = vadd.f32 0.0, %v501
    %v503 = vpop.f32.mrf.mxu0
    %504 = vdwg.mxu0
    %v506 = vsel %vm196, %v483, 0
    %v509 = vsel %vm268, %v485, 0
    %511 = vmatpush.bf16.msra.mxu0 0
    %512 = vmatpush.bf16.msra.mxu0 0
    %513 = vmatpush.bf16.msra.mxu0 0
    %514 = vmatpush.bf16.msra.mxu0 0
    %515 = vmatpush.bf16.msra.mxu0 0
    %516 = vmatpush.bf16.msra.mxu0 0
    %517 = vmatpush.bf16.msra.mxu0 0
    %518 = vmatpush.bf16.msra.mxu0 %v509
    %519 = vmatmul.bf16.gmra.mxu0 %v506
    %v520 = vpop.f32.mrf.mxu0
    %v521 = vadd.f32 0.0, %v520
    %v522 = vpop.f32.mrf.mxu0
    %523 = vdwg.mxu0
    %v524 = vpack.c.bf16 %v521, %v502
    %v526 = vsel %vm196, %v524, 0
    %v529 = vsel %vm268, %v94, 0
    %531 = vmatpush.bf16.msra.mxu0 0
    %532 = vmatpush.bf16.msra.mxu0 0
    %533 = vmatpush.bf16.msra.mxu0 0
    %534 = vmatpush.bf16.msra.mxu0 0
    %535 = vmatpush.bf16.msra.mxu0 0
    %536 = vmatpush.bf16.msra.mxu0 0
    %537 = vmatpush.bf16.msra.mxu0 0
    %538 = vmatpush.bf16.msra.mxu0 %v529
    %539 = vmatmul.bf16.gmra.mxu0 %v526
    %v540 = vpop.f32.mrf.mxu0
    %v541 = vadd.f32 0.0, %v540
    %v542 = vpop.f32.mrf.mxu0
    %v543 = vadd.f32 0.0, %v542
    %544 = vdwg.mxu0
    %v545 = vadd.f32 %v325, %v541
    %v546 = vadd.f32 %v326, %v543
    %v548 = vperm.slane %v83, 0
    %v554 = vunpack.c.l.b16 %v41
    %v555 = vunpack.c.l.b16 %v42
    %v556 = vunpack.c.l.b16 %v43
    %v557 = vunpack.c.l.b16 %v44
    %v558 = vpack.c.b16 %v555, %v554
    %v559 = vpack.c.b16 %v557, %v556
    %562 = vmatpush.bf16.msra.mxu0 0
    %563 = vmatpush.bf16.msra.mxu0 0
    %564 = vmatpush.bf16.msra.mxu0 0
    %565 = vmatpush.bf16.msra.mxu0 0
    %566 = vmatpush.bf16.msra.mxu0 0
    %567 = vmatpush.bf16.msra.mxu0 0
    %568 = vmatpush.bf16.msra.mxu0 %v559
    %569 = vmatpush.bf16.msra.mxu0 %v558
    %570 = vmatmul.bf16.gmra.mxu0 %v118
    %v571 = vpop.f32.mrf.mxu0
    %v572 = vadd.f32 %v548, %v571
    %v573 = vpop.f32.mrf.mxu0
    %v574 = vadd.f32 %v548, %v573
    %575 = vdwg.mxu0
    %v577 = vperm.slane %v87, 0
    %v583 = vunpack.c.l.b16 %v57
    %v584 = vunpack.c.l.b16 %v58
    %v585 = vunpack.c.l.b16 %v59
    %v586 = vunpack.c.l.b16 %v60
    %v587 = vpack.c.b16 %v584, %v583
    %v588 = vpack.c.b16 %v586, %v585
    %591 = vmatpush.bf16.msra.mxu0 0
    %592 = vmatpush.bf16.msra.mxu0 0
    %593 = vmatpush.bf16.msra.mxu0 0
    %594 = vmatpush.bf16.msra.mxu0 0
    %595 = vmatpush.bf16.msra.mxu0 0
    %596 = vmatpush.bf16.msra.mxu0 0
    %597 = vmatpush.bf16.msra.mxu0 %v588
    %598 = vmatpush.bf16.msra.mxu0 %v587
    %599 = vmatmul.bf16.gmra.mxu0 %v118
    %v600 = vpop.f32.mrf.mxu0
    %v601 = vadd.f32 %v577, %v600
    %v602 = vpop.f32.mrf.mxu0
    %v603 = vadd.f32 %v577, %v602
    %604 = vdwg.mxu0
    %v606 = vperm.slane %v91, 0
    %v612 = vunpack.c.l.b16 %v73
    %v613 = vunpack.c.l.b16 %v74
    %v614 = vunpack.c.l.b16 %v75
    %v615 = vunpack.c.l.b16 %v76
    %v616 = vpack.c.b16 %v613, %v612
    %v617 = vpack.c.b16 %v615, %v614
    %620 = vmatpush.bf16.msra.mxu0 0
    %621 = vmatpush.bf16.msra.mxu0 0
    %622 = vmatpush.bf16.msra.mxu0 0
    %623 = vmatpush.bf16.msra.mxu0 0
    %624 = vmatpush.bf16.msra.mxu0 0
    %625 = vmatpush.bf16.msra.mxu0 0
    %626 = vmatpush.bf16.msra.mxu0 %v617
    %627 = vmatpush.bf16.msra.mxu0 %v616
    %628 = vmatmul.bf16.gmra.mxu0 %v118
    %v629 = vpop.f32.mrf.mxu0
    %v630 = vadd.f32 %v606, %v629
    %v631 = vpop.f32.mrf.mxu0
    %v632 = vadd.f32 %v606, %v631
    %633 = vdwg.mxu0
    %v634 = vpack.c.bf16 %v572, %v572
    %v635 = vpack.c.bf16 %v574, %v574
    %v636 = vpack.c.bf16 %v601, %v601
    %v637 = vpack.c.bf16 %v603, %v603
    %v639 = vsel %vm196, %v634, 0
    %v642 = vsel %vm196, %v636, 0
    %644 = vmatpush.bf16.xpose.msra.mxu0 0
    %645 = vmatpush.bf16.xpose.msra.mxu0 0
    %646 = vmatpush.bf16.xpose.msra.mxu0 0
    %647 = vmatpush.bf16.xpose.msra.mxu0 0
    %648 = vmatpush.bf16.xpose.msra.mxu0 0
    %649 = vmatpush.bf16.xpose.msra.mxu0 0
    %650 = vmatpush.bf16.xpose.msra.mxu0 0
    %651 = vmatpush.bf16.xpose.msra.mxu0 %v642
    %652 = vmatmul.bf16.gmra.mxu0 %v639
    %v653 = vpop.f32.mrf.mxu0
    %v654 = vadd.f32 0.0, %v653
    %v655 = vpop.f32.mrf.mxu0
    %656 = vdwg.mxu0
    %v658 = vsel %vm196, %v635, 0
    %v661 = vsel %vm196, %v637, 0
    %663 = vmatpush.bf16.xpose.msra.mxu0 0
    %664 = vmatpush.bf16.xpose.msra.mxu0 0
    %665 = vmatpush.bf16.xpose.msra.mxu0 0
    %666 = vmatpush.bf16.xpose.msra.mxu0 0
    %667 = vmatpush.bf16.xpose.msra.mxu0 0
    %668 = vmatpush.bf16.xpose.msra.mxu0 0
    %669 = vmatpush.bf16.xpose.msra.mxu0 0
    %670 = vmatpush.bf16.xpose.msra.mxu0 %v661
    %671 = vmatmul.bf16.gmra.mxu0 %v658
    %v672 = vpop.f32.mrf.mxu0
    %v673 = vadd.f32 0.0, %v672
    %v674 = vpop.f32.mrf.mxu0
    %675 = vdwg.mxu0
    %v676 = vmul.f32 %v654, 0.35355338
    %v677 = vmul.f32 %v673, 0.35355338
    %v678 = vadd.f32 %v676, %v31
    %v679 = vadd.f32 %v677, %v32
    %v680 = vsel %vm196, %v678, -inf
    %681 = vmax.xlane.f32.xlu0 %v680
    %v682 = vpop.xlane.xlu0 %681
    %v683 = vsel %vm196, %v679, -inf
    %684 = vmax.xlane.f32.xlu0 %v683
    %v685 = vpop.xlane.xlu0 %684
    %v686 = vsub.f32 %v678, %v682
    %v687 = vsub.f32 %v679, %v685
    %v688 = vmul.f32 %v686, 1.442695
    %v689 = vpow.pop %v688
    %v690 = vmul.f32 %v687, 1.442695
    %v691 = vpow.pop %v690
    %v692 = vsel %vm196, %v689, 0.0
    %693 = vadd.xlane.f32.xlu0 %v692
    %v694 = vpop.xlane.xlu0 %693
    %v695 = vsel %vm196, %v691, 0.0
    %696 = vadd.xlane.f32.xlu0 %v695
    %v697 = vpop.xlane.xlu0 %696
    %v698 = vrcp.pop %v694
    %v699 = vrcp.pop %v697
    %v700 = vmul.f32 %v689, %v698
    %v701 = vmul.f32 %v691, %v699
    %v702 = vpack.c.bf16 %v700, %v700
    %v703 = vpack.c.bf16 %v701, %v701
    %v704 = vpack.c.bf16 %v630, %v630
    %v705 = vpack.c.bf16 %v632, %v632
    %v707 = vsel %vm196, %v702, 0
    %v710 = vsel %vm268, %v704, 0
    %712 = vmatpush.bf16.msra.mxu0 0
    %713 = vmatpush.bf16.msra.mxu0 0
    %714 = vmatpush.bf16.msra.mxu0 0
    %715 = vmatpush.bf16.msra.mxu0 0
    %716 = vmatpush.bf16.msra.mxu0 0
    %717 = vmatpush.bf16.msra.mxu0 0
    %718 = vmatpush.bf16.msra.mxu0 0
    %719 = vmatpush.bf16.msra.mxu0 %v710
    %720 = vmatmul.bf16.gmra.mxu0 %v707
    %v721 = vpop.f32.mrf.mxu0
    %v722 = vadd.f32 0.0, %v721
    %v723 = vpop.f32.mrf.mxu0
    %724 = vdwg.mxu0
    %v726 = vsel %vm196, %v703, 0
    %v729 = vsel %vm268, %v705, 0
    %731 = vmatpush.bf16.msra.mxu0 0
    %732 = vmatpush.bf16.msra.mxu0 0
    %733 = vmatpush.bf16.msra.mxu0 0
    %734 = vmatpush.bf16.msra.mxu0 0
    %735 = vmatpush.bf16.msra.mxu0 0
    %736 = vmatpush.bf16.msra.mxu0 0
    %737 = vmatpush.bf16.msra.mxu0 0
    %738 = vmatpush.bf16.msra.mxu0 %v729
    %739 = vmatmul.bf16.gmra.mxu0 %v726
    %v740 = vpop.f32.mrf.mxu0
    %v741 = vadd.f32 0.0, %v740
    %v742 = vpop.f32.mrf.mxu0
    %743 = vdwg.mxu0
    %v744 = vpack.c.bf16 %v741, %v722
    %v746 = vsel %vm196, %v744, 0
    %v749 = vsel %vm268, %v95, 0
    %751 = vmatpush.bf16.msra.mxu0 0
    %752 = vmatpush.bf16.msra.mxu0 0
    %753 = vmatpush.bf16.msra.mxu0 0
    %754 = vmatpush.bf16.msra.mxu0 0
    %755 = vmatpush.bf16.msra.mxu0 0
    %756 = vmatpush.bf16.msra.mxu0 0
    %757 = vmatpush.bf16.msra.mxu0 0
    %758 = vmatpush.bf16.msra.mxu0 %v749
    %759 = vmatmul.bf16.gmra.mxu0 %v746
    %v760 = vpop.f32.mrf.mxu0
    %v761 = vadd.f32 0.0, %v760
    %v762 = vpop.f32.mrf.mxu0
    %v763 = vadd.f32 0.0, %v762
    %764 = vdwg.mxu0
    %v765 = vadd.f32 %v545, %v761
    %v766 = vadd.f32 %v546, %v763
    %v768 = vperm.slane %v84, 0
    %v774 = vunpack.c.l.b16 %v45
    %v775 = vunpack.c.l.b16 %v46
    %v776 = vunpack.c.l.b16 %v47
    %v777 = vunpack.c.l.b16 %v48
    %v778 = vpack.c.b16 %v775, %v774
    %v779 = vpack.c.b16 %v777, %v776
    %782 = vmatpush.bf16.msra.mxu0 0
    %783 = vmatpush.bf16.msra.mxu0 0
    %784 = vmatpush.bf16.msra.mxu0 0
    %785 = vmatpush.bf16.msra.mxu0 0
    %786 = vmatpush.bf16.msra.mxu0 0
    %787 = vmatpush.bf16.msra.mxu0 0
    %788 = vmatpush.bf16.msra.mxu0 %v779
    %789 = vmatpush.bf16.msra.mxu0 %v778
    %790 = vmatmul.bf16.gmra.mxu0 %v118
    %v791 = vpop.f32.mrf.mxu0
    %v792 = vadd.f32 %v768, %v791
    %v793 = vpop.f32.mrf.mxu0
    %v794 = vadd.f32 %v768, %v793
    %795 = vdwg.mxu0
    %v797 = vperm.slane %v88, 0
    %v803 = vunpack.c.l.b16 %v61
    %v804 = vunpack.c.l.b16 %v62
    %v805 = vunpack.c.l.b16 %v63
    %v806 = vunpack.c.l.b16 %v64
    %v807 = vpack.c.b16 %v804, %v803
    %v808 = vpack.c.b16 %v806, %v805
    %811 = vmatpush.bf16.msra.mxu0 0
    %812 = vmatpush.bf16.msra.mxu0 0
    %813 = vmatpush.bf16.msra.mxu0 0
    %814 = vmatpush.bf16.msra.mxu0 0
    %815 = vmatpush.bf16.msra.mxu0 0
    %816 = vmatpush.bf16.msra.mxu0 0
    %817 = vmatpush.bf16.msra.mxu0 %v808
    %818 = vmatpush.bf16.msra.mxu0 %v807
    %819 = vmatmul.bf16.gmra.mxu0 %v118
    %v820 = vpop.f32.mrf.mxu0
    %v821 = vadd.f32 %v797, %v820
    %v822 = vpop.f32.mrf.mxu0
    %v823 = vadd.f32 %v797, %v822
    %824 = vdwg.mxu0
    %v826 = vperm.slane %v92, 0
    %v832 = vunpack.c.l.b16 %v77
    %v833 = vunpack.c.l.b16 %v78
    %v834 = vunpack.c.l.b16 %v79
    %v835 = vunpack.c.l.b16 %v80
    %v836 = vpack.c.b16 %v833, %v832
    %v837 = vpack.c.b16 %v835, %v834
    %840 = vmatpush.bf16.msra.mxu0 0
    %841 = vmatpush.bf16.msra.mxu0 0
    %842 = vmatpush.bf16.msra.mxu0 0
    %843 = vmatpush.bf16.msra.mxu0 0
    %844 = vmatpush.bf16.msra.mxu0 0
    %845 = vmatpush.bf16.msra.mxu0 0
    %846 = vmatpush.bf16.msra.mxu0 %v837
    %847 = vmatpush.bf16.msra.mxu0 %v836
    %848 = vmatmul.bf16.gmra.mxu0 %v118
    %v849 = vpop.f32.mrf.mxu0
    %v850 = vadd.f32 %v826, %v849
    %v851 = vpop.f32.mrf.mxu0
    %v852 = vadd.f32 %v826, %v851
    %853 = vdwg.mxu0
    %v854 = vpack.c.bf16 %v792, %v792
    %v855 = vpack.c.bf16 %v794, %v794
    %v856 = vpack.c.bf16 %v821, %v821
    %v857 = vpack.c.bf16 %v823, %v823
    %v859 = vsel %vm196, %v854, 0
    %v862 = vsel %vm196, %v856, 0
    %864 = vmatpush.bf16.xpose.msra.mxu0 0
    %865 = vmatpush.bf16.xpose.msra.mxu0 0
    %866 = vmatpush.bf16.xpose.msra.mxu0 0
    %867 = vmatpush.bf16.xpose.msra.mxu0 0
    %868 = vmatpush.bf16.xpose.msra.mxu0 0
    %869 = vmatpush.bf16.xpose.msra.mxu0 0
    %870 = vmatpush.bf16.xpose.msra.mxu0 0
    %871 = vmatpush.bf16.xpose.msra.mxu0 %v862
    %872 = vmatmul.bf16.gmra.mxu0 %v859
    %v873 = vpop.f32.mrf.mxu0
    %v874 = vadd.f32 0.0, %v873
    %v875 = vpop.f32.mrf.mxu0
    %876 = vdwg.mxu0
    %v878 = vsel %vm196, %v855, 0
    %v881 = vsel %vm196, %v857, 0
    %883 = vmatpush.bf16.xpose.msra.mxu0 0
    %884 = vmatpush.bf16.xpose.msra.mxu0 0
    %885 = vmatpush.bf16.xpose.msra.mxu0 0
    %886 = vmatpush.bf16.xpose.msra.mxu0 0
    %887 = vmatpush.bf16.xpose.msra.mxu0 0
    %888 = vmatpush.bf16.xpose.msra.mxu0 0
    %889 = vmatpush.bf16.xpose.msra.mxu0 0
    %890 = vmatpush.bf16.xpose.msra.mxu0 %v881
    %891 = vmatmul.bf16.gmra.mxu0 %v878
    %v892 = vpop.f32.mrf.mxu0
    %v893 = vadd.f32 0.0, %v892
    %v894 = vpop.f32.mrf.mxu0
    %895 = vdwg.mxu0
    %v896 = vmul.f32 %v874, 0.35355338
    %v897 = vmul.f32 %v893, 0.35355338
    %v898 = vadd.f32 %v896, %v31
    %v899 = vadd.f32 %v897, %v32
    %v900 = vsel %vm196, %v898, -inf
    %901 = vmax.xlane.f32.xlu0 %v900
    %v902 = vpop.xlane.xlu0 %901
    %v903 = vsel %vm196, %v899, -inf
    %904 = vmax.xlane.f32.xlu0 %v903
    %v905 = vpop.xlane.xlu0 %904
    %v906 = vsub.f32 %v898, %v902
    %v907 = vsub.f32 %v899, %v905
    %v908 = vmul.f32 %v906, 1.442695
    %v909 = vpow.pop %v908
    %v910 = vmul.f32 %v907, 1.442695
    %v911 = vpow.pop %v910
    %v912 = vsel %vm196, %v909, 0.0
    %913 = vadd.xlane.f32.xlu0 %v912
    %v914 = vpop.xlane.xlu0 %913
    %v915 = vsel %vm196, %v911, 0.0
    %916 = vadd.xlane.f32.xlu0 %v915
    %v917 = vpop.xlane.xlu0 %916
    %v918 = vrcp.pop %v914
    %v919 = vrcp.pop %v917
    %v920 = vmul.f32 %v909, %v918
    %v921 = vmul.f32 %v911, %v919
    %v922 = vpack.c.bf16 %v920, %v920
    %v923 = vpack.c.bf16 %v921, %v921
    %v924 = vpack.c.bf16 %v850, %v850
    %v925 = vpack.c.bf16 %v852, %v852
    %v927 = vsel %vm196, %v922, 0
    %v930 = vsel %vm268, %v924, 0
    %932 = vmatpush.bf16.msra.mxu0 0
    %933 = vmatpush.bf16.msra.mxu0 0
    %934 = vmatpush.bf16.msra.mxu0 0
    %935 = vmatpush.bf16.msra.mxu0 0
    %936 = vmatpush.bf16.msra.mxu0 0
    %937 = vmatpush.bf16.msra.mxu0 0
    %938 = vmatpush.bf16.msra.mxu0 0
    %939 = vmatpush.bf16.msra.mxu0 %v930
    %940 = vmatmul.bf16.gmra.mxu0 %v927
    %v941 = vpop.f32.mrf.mxu0
    %v942 = vadd.f32 0.0, %v941
    %v943 = vpop.f32.mrf.mxu0
    %944 = vdwg.mxu0
    %v946 = vsel %vm196, %v923, 0
    %v949 = vsel %vm268, %v925, 0
    %951 = vmatpush.bf16.msra.mxu0 0
    %952 = vmatpush.bf16.msra.mxu0 0
    %953 = vmatpush.bf16.msra.mxu0 0
    %954 = vmatpush.bf16.msra.mxu0 0
    %955 = vmatpush.bf16.msra.mxu0 0
    %956 = vmatpush.bf16.msra.mxu0 0
    %957 = vmatpush.bf16.msra.mxu0 0
    %958 = vmatpush.bf16.msra.mxu0 %v949
    %959 = vmatmul.bf16.gmra.mxu0 %v946
    %v960 = vpop.f32.mrf.mxu0
    %v961 = vadd.f32 0.0, %v960
    %v962 = vpop.f32.mrf.mxu0
    %963 = vdwg.mxu0
    %v964 = vpack.c.bf16 %v961, %v942
    %v966 = vsel %vm196, %v964, 0
    %v969 = vsel %vm268, %v96, 0
    %971 = vmatpush.bf16.msra.mxu0 0
    %972 = vmatpush.bf16.msra.mxu0 0
    %973 = vmatpush.bf16.msra.mxu0 0
    %974 = vmatpush.bf16.msra.mxu0 0
    %975 = vmatpush.bf16.msra.mxu0 0
    %976 = vmatpush.bf16.msra.mxu0 0
    %977 = vmatpush.bf16.msra.mxu0 0
    %978 = vmatpush.bf16.msra.mxu0 %v969
    %979 = vmatmul.bf16.gmra.mxu0 %v966
    %v980 = vpop.f32.mrf.mxu0
    %v981 = vadd.f32 0.0, %v980
    %v982 = vpop.f32.mrf.mxu0
    %v983 = vadd.f32 0.0, %v982
    %984 = vdwg.mxu0
    %v985 = vadd.f32 %v765, %v981
    %v986 = vadd.f32 %v766, %v983
    %v987 = vsel %vm116, %v985, 0.0
    %988 = vadd.xlane.f32.xlu0 %v987
    %v989 = vpop.xlane.xlu0 %988
    %v990 = vsel %vm116, %v986, 0.0
    %991 = vadd.xlane.f32.xlu0 %v990
    %v992 = vpop.xlane.xlu0 %991
    %v993 = vrcp.pop 32.0
    %v994 = vmul.f32 32.0, %v993
    %v995 = vsub.f32 1.0, %v994
    %v996 = vmul.f32 %v993, %v995
    %v997 = vadd.f32 %v993, %v996
    %vm998 = vweird.f32 %v993
    %v999 = vsel %vm998, %v993, %v997
    %v1000 = vmul.f32 %v989, %v999
    %v1001 = vmul.f32 %v992, %v999
    %v1002 = vsub.f32 %v985, %v1000
    %v1003 = vsub.f32 %v986, %v1001
    %v1004 = vmul.f32 %v1002, %v1002
    %v1005 = vmul.f32 %v1003, %v1003
    %v1006 = vsel %vm116, %v1004, 0.0
    %1007 = vadd.xlane.f32.xlu0 %v1006
    %v1008 = vpop.xlane.xlu0 %1007
    %v1009 = vsel %vm116, %v1005, 0.0
    %1010 = vadd.xlane.f32.xlu0 %v1009
    %v1011 = vpop.xlane.xlu0 %1010
    %v1012 = vmul.f32 %v1008, %v999
    %v1013 = vmul.f32 %v1011, %v999
    %v1014 = vadd.f32 %v1012, 1e-12
    %v1015 = vadd.f32 %v1013, 1e-12
    %v1016 = vrsqrt.pop %v1014
    %v1017 = vmul.f32 %v1016, %v1014
    %v1018 = vmul.f32 %v1017, %v1016
    %v1019 = vmul.f32 0.5, %v1018
    %v1020 = vsub.f32 1.5, %v1019
    %v1021 = vmul.f32 %v1016, %v1020
    %vm1022 = vweird.f32 %v1014
    %vm1023 = vweird.f32 %v1016
    %vm1024 = vmor %vm1022, %vm1023
    %v1025 = vsel %vm1024, %v1016, %v1021
    %v1026 = vrsqrt.pop %v1015
    %v1027 = vmul.f32 %v1026, %v1015
    %v1028 = vmul.f32 %v1027, %v1026
    %v1029 = vmul.f32 0.5, %v1028
    %v1030 = vsub.f32 1.5, %v1029
    %v1031 = vmul.f32 %v1026, %v1030
    %vm1032 = vweird.f32 %v1015
    %vm1033 = vweird.f32 %v1026
    %vm1034 = vmor %vm1032, %vm1033
    %v1035 = vsel %vm1034, %v1026, %v1031
    %v1036 = vmul.f32 %v1002, %v1025
    %v1037 = vmul.f32 %v1003, %v1035
    %v1038 = vperm.slane %v97, 1
    %v1039 = vmul.f32 %v1036, %v1038
    %v1040 = vmul.f32 %v1037, %v1038
    %v1041 = vperm.slane %v97, 2
    %v1042 = vadd.f32 %v1039, %v1041
    %v1043 = vadd.f32 %v1040, %v1041
    %v1044 = vld [vmem:[%s5] sm:$0xf]
    %v1045 = vld [vmem:[%s5 + $0x4] sm:$0xf]
    %v1046 = vld [vmem:[%s5 + $0x8] sm:$0xf]
    %v1047 = vld [vmem:[%s5 + $0xc] sm:$0xf]
    %s1048 = scalar_lea.vmem %s5, 16
    %v1049 = vld [vmem:[%s1048] sm:$0xf]
    %v1050 = vld [vmem:[%s1048 + $0x4] sm:$0xf]
    %v1051 = vld [vmem:[%s1048 + $0x8] sm:$0xf]
    %v1052 = vld [vmem:[%s1048 + $0xc] sm:$0xf]
    %v1053 = vpack.c.bf16 %v1043, %v1042
    %v1054 = vperm.slane %v97, 6
    %v1059 = vunpack.c.l.b16 %v1044
    %v1060 = vunpack.c.l.b16 %v1045
    %v1061 = vunpack.c.l.b16 %v1046
    %v1062 = vunpack.c.l.b16 %v1047
    %v1063 = vpack.c.b16 %v1060, %v1059
    %v1064 = vpack.c.b16 %v1062, %v1061
    %v1068 = vsel %vm116, %v1053, 0
    %1070 = vmatpush.bf16.msra.mxu0 0
    %1071 = vmatpush.bf16.msra.mxu0 0
    %1072 = vmatpush.bf16.msra.mxu0 0
    %1073 = vmatpush.bf16.msra.mxu0 0
    %1074 = vmatpush.bf16.msra.mxu0 0
    %1075 = vmatpush.bf16.msra.mxu0 0
    %1076 = vmatpush.bf16.msra.mxu0 %v1064
    %1077 = vmatpush.bf16.msra.mxu0 %v1063
    %1078 = vmatmul.bf16.gmra.mxu0 %v1068
    %v1079 = vpop.f32.mrf.mxu0
    %v1080 = vadd.f32 %v1054, %v1079
    %v1081 = vpop.f32.mrf.mxu0
    %v1082 = vadd.f32 %v1054, %v1081
    %1083 = vdwg.mxu0
    %v1084 = vmul.f32 %v1080, 0.5
    %v1085 = vmul.f32 %v1082, 0.5
    %v1086 = vrcp.pop 1.4142135
    %v1087 = vmul.f32 1.4142135, %v1086
    %v1088 = vsub.f32 1.0, %v1087
    %v1089 = vmul.f32 %v1086, %v1088
    %v1090 = vadd.f32 %v1086, %v1089
    %vm1091 = vweird.f32 %v1086
    %v1092 = vsel %vm1091, %v1086, %v1090
    %v1093 = vmul.f32 %v1080, %v1092
    %v1094 = vmul.f32 %v1082, %v1092
    %v1095 = vmul.f32 %v1093, %v1093
    %v1096 = vmin.f32 16.0, %v1095
    %v1097 = vmul.f32 %v1096, 2.1237322e-06
    %v1098 = vadd.f32 %v1097, 0.00028619796
    %v1099 = vmul.f32 %v1096, %v1098
    %v1100 = vadd.f32 %v1099, 0.0036580483
    %v1101 = vmul.f32 %v1096, %v1100
    %v1102 = vadd.f32 %v1101, 0.05243302
    %v1103 = vmul.f32 %v1096, %v1102
    %v1104 = vadd.f32 %v1103, 0.18741608
    %v1105 = vmul.f32 %v1096, %v1104
    %v1106 = vadd.f32 %v1105, 1.1283791
    %v1107 = vmul.f32 %v1093, %v1106
    %v1108 = vmul.f32 %v1096, 3.8918573e-05
    %v1109 = vadd.f32 %v1108, 0.001143296
    %v1110 = vmul.f32 %v1096, %v1109
    %v1111 = vadd.f32 %v1110, 0.014752088
    %v1112 = vmul.f32 %v1096, %v1111
    %v1113 = vadd.f32 %v1112, 0.112945676
    %v1114 = vmul.f32 %v1096, %v1113
    %v1115 = vadd.f32 %v1114, 0.4994258
    %v1116 = vmul.f32 %v1096, %v1115
    %v1117 = vadd.f32 %v1116, 1.0
    %v1118 = vrcp.pop %v1117
    %v1119 = vmul.f32 %v1117, %v1118
    %v1120 = vsub.f32 1.0, %v1119
    %v1121 = vmul.f32 %v1118, %v1120
    %v1122 = vadd.f32 %v1118, %v1121
    %vm1123 = vweird.f32 %v1117
    %vm1124 = vweird.f32 %v1118
    %vm1125 = vmor %vm1123, %vm1124
    %v1126 = vsel %vm1125, %v1118, %v1122
    %v1127 = vand.u32 2147483647, %v1117
    %vm1128 = vcmp.eq.f32.partialorder %v1127, 8.507059e+37
    %v1129 = vand.u32 %v1117, 2147483648
    %v1130 = vor.u32 1.1754944e-38, %v1129
    %v1131 = vsel %vm1128, %v1130, %v1126
    %v1132 = vmul.f32 %v1107, %v1131
    %v1133 = vmin.f32 %v1132, 1.0
    %v1134 = vmax.f32 %v1133, -1.0
    %v1135 = vmul.f32 %v1094, %v1094
    %v1136 = vmin.f32 16.0, %v1135
    %v1137 = vmul.f32 %v1136, 2.1237322e-06
    %v1138 = vadd.f32 %v1137, 0.00028619796
    %v1139 = vmul.f32 %v1136, %v1138
    %v1140 = vadd.f32 %v1139, 0.0036580483
    %v1141 = vmul.f32 %v1136, %v1140
    %v1142 = vadd.f32 %v1141, 0.05243302
    %v1143 = vmul.f32 %v1136, %v1142
    %v1144 = vadd.f32 %v1143, 0.18741608
    %v1145 = vmul.f32 %v1136, %v1144
    %v1146 = vadd.f32 %v1145, 1.1283791
    %v1147 = vmul.f32 %v1094, %v1146
    %v1148 = vmul.f32 %v1136, 3.8918573e-05
    %v1149 = vadd.f32 %v1148, 0.001143296
    %v1150 = vmul.f32 %v1136, %v1149
    %v1151 = vadd.f32 %v1150, 0.014752088
    %v1152 = vmul.f32 %v1136, %v1151
    %v1153 = vadd.f32 %v1152, 0.112945676
    %v1154 = vmul.f32 %v1136, %v1153
    %v1155 = vadd.f32 %v1154, 0.4994258
    %v1156 = vmul.f32 %v1136, %v1155
    %v1157 = vadd.f32 %v1156, 1.0
    %v1158 = vrcp.pop %v1157
    %v1159 = vmul.f32 %v1157, %v1158
    %v1160 = vsub.f32 1.0, %v1159
    %v1161 = vmul.f32 %v1158, %v1160
    %v1162 = vadd.f32 %v1158, %v1161
    %vm1163 = vweird.f32 %v1157
    %vm1164 = vweird.f32 %v1158
    %vm1165 = vmor %vm1163, %vm1164
    %v1166 = vsel %vm1165, %v1158, %v1162
    %v1167 = vand.u32 2147483647, %v1157
    %vm1168 = vcmp.eq.f32.partialorder %v1167, 8.507059e+37
    %v1169 = vand.u32 %v1157, 2147483648
    %v1170 = vor.u32 1.1754944e-38, %v1169
    %v1171 = vsel %vm1168, %v1170, %v1166
    %v1172 = vmul.f32 %v1147, %v1171
    %v1173 = vmin.f32 %v1172, 1.0
    %v1174 = vmax.f32 %v1173, -1.0
    %v1175 = vadd.f32 %v1134, 1.0
    %v1176 = vadd.f32 %v1174, 1.0
    %v1177 = vmul.f32 %v1084, %v1175
    %v1178 = vmul.f32 %v1085, %v1176
    %v1179 = vpack.c.bf16 %v1178, %v1177
    %v1180 = vperm.slane %v97, 3
    %v1185 = vunpack.c.l.b16 %v1049
    %v1186 = vunpack.c.l.b16 %v1050
    %v1187 = vunpack.c.l.b16 %v1051
    %v1188 = vunpack.c.l.b16 %v1052
    %v1189 = vpack.c.b16 %v1186, %v1185
    %v1190 = vpack.c.b16 %v1188, %v1187
    %vm1191 = vcmask 523264
    %v1193 = vsel %vm1191, %v1179, 0
    %v1196 = vsel %vm1191, %v1189, 0
    %v1199 = vsel %vm1191, %v1190, 0
    %1201 = vmatpush.bf16.xpose.msra.mxu0 0
    %1202 = vmatpush.bf16.xpose.msra.mxu0 0
    %1203 = vmatpush.bf16.xpose.msra.mxu0 0
    %1204 = vmatpush.bf16.xpose.msra.mxu0 0
    %1205 = vmatpush.bf16.xpose.msra.mxu0 0
    %1206 = vmatpush.bf16.xpose.msra.mxu0 0
    %1207 = vmatpush.bf16.xpose.msra.mxu0 %v1199
    %1208 = vmatpush.bf16.xpose.msra.mxu0 %v1196
    %1209 = vmatmul.bf16.gmra.mxu0 %v1193
    %v1210 = vpop.f32.mrf.mxu0
    %v1211 = vadd.f32 %v1180, %v1210
    %v1212 = vpop.f32.mrf.mxu0
    %v1213 = vadd.f32 %v1180, %v1212
    %1214 = vdwg.mxu0
    %v1215 = vadd.f32 %v1211, %v1042
    %v1216 = vadd.f32 %v1213, %v1043
    %v1217 = vsel %vm116, %v1215, 0.0
    %1218 = vadd.xlane.f32.xlu0 %v1217
    %v1219 = vpop.xlane.xlu0 %1218
    %v1220 = vsel %vm116, %v1216, 0.0
    %1221 = vadd.xlane.f32.xlu0 %v1220
    %v1222 = vpop.xlane.xlu0 %1221
    %v1223 = vmul.f32 %v1219, %v999
    %v1224 = vmul.f32 %v1222, %v999
    %v1225 = vsub.f32 %v1215, %v1223
    %v1226 = vsub.f32 %v1216, %v1224
    %v1227 = vmul.f32 %v1225, %v1225
    %v1228 = vmul.f32 %v1226, %v1226
    %v1229 = vsel %vm116, %v1227, 0.0
    %1230 = vadd.xlane.f32.xlu0 %v1229
    %v1231 = vpop.xlane.xlu0 %1230
    %v1232 = vsel %vm116, %v1228, 0.0
    %1233 = vadd.xlane.f32.xlu0 %v1232
    %v1234 = vpop.xlane.xlu0 %1233
    %v1235 = vmul.f32 %v1231, %v999
    %v1236 = vmul.f32 %v1234, %v999
    %v1237 = vadd.f32 %v1235, 1e-12
    %v1238 = vadd.f32 %v1236, 1e-12
    %v1239 = vrsqrt.pop %v1237
    %v1240 = vmul.f32 %v1239, %v1237
    %v1241 = vmul.f32 %v1240, %v1239
    %v1242 = vmul.f32 0.5, %v1241
    %v1243 = vsub.f32 1.5, %v1242
    %v1244 = vmul.f32 %v1239, %v1243
    %vm1245 = vweird.f32 %v1237
    %vm1246 = vweird.f32 %v1239
    %vm1247 = vmor %vm1245, %vm1246
    %v1248 = vsel %vm1247, %v1239, %v1244
    %v1249 = vrsqrt.pop %v1238
    %v1250 = vmul.f32 %v1249, %v1238
    %v1251 = vmul.f32 %v1250, %v1249
    %v1252 = vmul.f32 0.5, %v1251
    %v1253 = vsub.f32 1.5, %v1252
    %v1254 = vmul.f32 %v1249, %v1253
    %vm1255 = vweird.f32 %v1238
    %vm1256 = vweird.f32 %v1249
    %vm1257 = vmor %vm1255, %vm1256
    %v1258 = vsel %vm1257, %v1249, %v1254
    %v1259 = vmul.f32 %v1225, %v1248
    %v1260 = vmul.f32 %v1226, %v1258
    %v1261 = vperm.slane %v97, 4
    %v1262 = vmul.f32 %v1259, %v1261
    %v1263 = vmul.f32 %v1260, %v1261
    %v1264 = vperm.slane %v97, 5
    %v1265 = vadd.f32 %v1262, %v1264
    %v1266 = vadd.f32 %v1263, %v1264
    %1267 = vst.msk [vmem:[#allocation2] sm:$0xff] %vm116, %v1265
    %1268 = vst.msk [vmem:[#allocation2 + $0x8] sm:$0xff] %vm116, %v1266
    // Predicated region
    $region30: #{bert_layer.1} parent=1 // pred_check
      _
    $region31: #{bert_layer.1} parent=1 // pred_check_branch
      %1270 = sbr.rel (0) target = $region33
    $region32: #{bert_layer.1} parent=1 // pred_region
      %1272 = vsyncadd [#allocation3], 0
      %s1273 = sshll.u32 [#allocation2], 4
      %s1274 = int_to_ptr.vmem [resolvable:$true] %s1273
      %s1275 = sshll.u32 %s7, 4
      %s1276 = int_to_ptr.hbm [resolvable:$true] %s1275
      %1281 = dma.vmem_to_hbm [thread:$0]  %s1274, 256, %s1276, [#allocation3], 128, 128, 8
    $region33: #{bert_layer.1} parent=1 // pred_fallthru
      _
    // Predicated region
    $region34: #{bert_layer.1} parent=1 // pred_check
      _
    $region35: #{bert_layer.1} parent=1 // pred_check_branch
      %1283 = sbr.rel (0) target = $region37
    $region36: #{bert_layer.1} parent=1 // pred_region
      %1285 = dma.done [#allocation3], 256
    $region37: #{bert_layer.1} parent=1 // pred_fallthru
      _
    %1286 = vsyncpa [#allocation3], 1

</llo_original>
